<compile_context>
chip_gen: v5e
topology: v5e:2x2
jax: 0.10.0
libtpu: 0.0.40
codegen_flags: <defaults>
</compile_context>

<pallas_src>
import functools

import jax
import jax.numpy as jnp
from jax import lax
from jax.experimental import pallas as pl
from jax.experimental.pallas import tpu as pltpu


def gru_kernel(x_ref, wih_ref, whh_ref, bgi_ref, bhn_ref, out_ref,
               h_scratch, gi_scratch, *, hidden_size):
    """One grid step == one (Tb, Bb) tile of the GRU.

    x_ref     : (Tb, Bb, I)     input tile
    wih_ref   : (I, 3H)  bf16   input->hidden weights (whole array, VMEM-resident)
    whh_ref   : (H, 3H)  bf16   hidden->hidden weights (whole array, VMEM-resident)
    bgi_ref   : (1, 3H)  f32    b_ih with b_hr/b_hz folded in (r,z slices)
    bhn_ref   : (1, H)   f32    b_hn (must stay inside the r-gated term)
    out_ref   : (Tb, Bb, H)     output tile (bf16 by default)
    h_scratch : (Bb, H)  f32    VMEM accumulator carrying h across time blocks
    gi_scratch: (Tb*Bb, 3H) f32 VMEM scratch holding the batched input projection
    """
    H = hidden_size
    Tb, Bb, I = x_ref.shape

    # NOTE: correctness of the carried hidden state requires the time axis to stay the
    # innermost, sequentially executed ("arbitrary") grid axis, re-initialized at
    # t_blk == 0. Do not reorder the grid or mark time "parallel".
    t_blk = pl.program_id(1)

    @pl.when(t_blk == 0)
    def _():
        h_scratch[...] = jnp.zeros_like(h_scratch)

    # ---- Batched input projection for the whole time tile: (Tb*Bb, I) @ (I, 3H) on
    # the MXU, off the serial critical path. b_ih and the r/z parts of b_hh are folded
    # in once here. bf16 inputs, f32 accumulation, result parked in VMEM scratch. ----
    x_all = x_ref[...].reshape(Tb * Bb, I).astype(jnp.bfloat16)
    gi_scratch[...] = (
        jnp.dot(x_all, wih_ref[...], preferred_element_type=jnp.float32)
        + bgi_ref[...])

    whh = whh_ref[...]                                      # (H, 3H) bf16
    bhn = jnp.broadcast_to(bhn_ref[...], (Bb, H))           # hoisted broadcast (f32)

    def step(tt, h_prev):
        row = pl.multiple_of(tt * Bb, 8)                    # Bb % 8 == 0 by contract
        gi = gi_scratch[pl.ds(row, Bb), :]                  # (Bb, 3H) f32
        gh = jnp.dot(h_prev.astype(jnp.bfloat16), whh,
                     preferred_element_type=jnp.float32)    # (Bb, 3H) f32

        r = jax.nn.sigmoid(gi[:, 0:H] + gh[:, 0:H])
        z = jax.nn.sigmoid(gi[:, H:2 * H] + gh[:, H:2 * H])
        n = jnp.tanh(gi[:, 2 * H:3 * H] + r * (gh[:, 2 * H:3 * H] + bhn))
        h_t = n + z * (h_prev - n)                          # == (1-z)*n + z*h_prev

        out_ref[tt] = h_t.astype(out_ref.dtype)
        return h_t

    unroll = True if Tb <= 8 else 8                         # partial unroll at big Tb
    h_scratch[...] = lax.fori_loop(0, Tb, step, h_scratch[...], unroll=unroll)


def gru_pallas(x, w_ih, w_hh, b_ih, b_hh, *, block_t=128, block_b=None,
               out_dtype=jnp.bfloat16):
    """x: (T, B, I); w_ih: (3H, I); w_hh: (3H, H); b_ih, b_hh: (3H,).

    Returns (outputs (T, B, H), h_n (1, B, H)) — same as torch.nn.GRU with h_0 = 0.
    Outputs are bf16 by default (pass out_dtype=jnp.float32 if f32 is required).
    """
    T, B, I = x.shape
    H = w_hh.shape[1]
    assert w_ih.shape == (3 * H, I) and w_hh.shape == (3 * H, H)

    # ---- Batch tiling. Split the 'parallel' batch axis (usable by v7x's 2 TCs) only
    # when each half still fills the MXU M dimension reasonably (>= 64 rows). Bb must
    # always be a multiple of 8 so the in-kernel (Tb,Bb,I)->(Tb*Bb,I) reshape stays on
    # (8,128) tile boundaries. ----
    if block_b is None:
        if B % 2 == 0 and (B // 2) % 8 == 0 and (B // 2) >= 64:
            Bb = B // 2
        else:
            Bb = B
    else:
        Bb = block_b
    assert B % Bb == 0 and Bb % 8 == 0, "batch tile must divide B and be a multiple of 8"

    # ---- VMEM budget: per-generation capacity minus ~25% headroom for compiler
    # scratch / pipelining (≈48 MiB on v7x, ≈96 MiB on v5e/v6e). ----
    try:
        vmem_cap = int(pltpu.get_tpu_info().vmem_capacity_bytes)
    except Exception:
        vmem_cap = 64 * 2**20
    vmem_budget = int(0.75 * vmem_cap)

    in_isz = jnp.dtype(x.dtype).itemsize
    out_isz = jnp.dtype(out_dtype).itemsize

    def vmem_estimate(tb):
        return (2 * tb * Bb * I * in_isz       # x tile, double-buffered
                + 2 * tb * Bb * H * out_isz    # out tile, double-buffered
                + tb * Bb * 3 * H * 4          # gi VMEM scratch (f32)
                + (I + H) * 3 * H * 2          # bf16 weights (single copy, resident)
                + 3 * H * 4 + H * 4            # biases
                + Bb * H * 4)                  # carried hidden-state scratch (f32)

    # ---- Time tiling: start at block_t (default 128) and shrink only if the exact
    # buffer sum (+20%) would exceed the budget. ----
    Tb = max(1, min(block_t, T))
    while Tb > 8 and int(1.2 * vmem_estimate(Tb)) > vmem_budget:
        Tb = max(8, Tb // 2)
    n_t = -(-T // Tb)                          # ceil
    T_pad = n_t * Tb
    if T_pad != T:
        x = jnp.concatenate([x, jnp.zeros((T_pad - T, B, I), x.dtype)], axis=0)

    vmem_limit = int(min(vmem_budget, max(16 * 2**20, int(1.2 * vmem_estimate(Tb)))))

    # ---- Glue: pre-transpose + bf16-cast weights so the kernel does (M,K)@(K,3H)
    # bf16 MXU matmuls. Fold b_ih + [b_hr, b_hz, 0] into one (1,3H) bias applied with
    # the batched input projection; only b_hn stays on the per-step path. ----
    wih_t = jnp.asarray(w_ih).astype(jnp.bfloat16).T                     # (I, 3H)
    whh_t = jnp.asarray(w_hh).astype(jnp.bfloat16).T                     # (H, 3H)
    b_ih_f = jnp.asarray(b_ih, jnp.float32)
    b_hh_f = jnp.asarray(b_hh, jnp.float32)
    bgi = (b_ih_f + jnp.concatenate(
        [b_hh_f[:2 * H], jnp.zeros((H,), jnp.float32)])).reshape(1, 3 * H)
    bhn = b_hh_f[2 * H:].reshape(1, H)

    kernel = functools.partial(gru_kernel, hidden_size=H)

    out = pl.pallas_call(
        kernel,
        out_shape=jax.ShapeDtypeStruct((T_pad, B, H), out_dtype),
        grid_spec=pltpu.PrefetchScalarGridSpec(
            num_scalar_prefetch=0,
            grid=(B // Bb, n_t),            # (batch: parallel, time: innermost/sequential)
            in_specs=[
                pl.BlockSpec((Tb, Bb, I), lambda b, t: (t, b, 0)),        # x tile
                pl.BlockSpec(memory_space=pltpu.MemorySpace.VMEM),        # W_ih^T bf16
                pl.BlockSpec(memory_space=pltpu.MemorySpace.VMEM),        # W_hh^T bf16
                pl.BlockSpec(memory_space=pltpu.MemorySpace.VMEM),        # folded gi bias
                pl.BlockSpec(memory_space=pltpu.MemorySpace.VMEM),        # b_hn
            ],
            out_specs=pl.BlockSpec((Tb, Bb, H), lambda b, t: (t, b, 0)),  # out tile
            scratch_shapes=[
                pltpu.VMEM((Bb, H), jnp.float32),              # carried hidden state
                pltpu.VMEM((Tb * Bb, 3 * H), jnp.float32),     # gi for the time tile
            ],
        ),
        compiler_params=pltpu.CompilerParams(
            dimension_semantics=("parallel", "arbitrary"),  # time MUST stay "arbitrary"
            vmem_limit_bytes=vmem_limit,
        ),
    )(x, wih_t, whh_t, bgi, bhn)

    out = out[:T]
    h_n = out[-1:]                    # (1, B, H): num_layers * num_directions == 1
    return out, h_n


def gru_reference(x, w_ih, w_hh, b_ih, b_hh):
    """Pure-JAX f32 reference (matches torch.nn.GRU with zero initial state)."""
    H = w_hh.shape[1]

    def step(h, x_t):
        gi = x_t @ w_ih.T + b_ih
        gh = h @ w_hh.T + b_hh
        i_r, i_z, i_n = gi[:, :H], gi[:, H:2 * H], gi[:, 2 * H:]
        h_r, h_z, h_n = gh[:, :H], gh[:, H:2 * H], gh[:, 2 * H:]
        r = jax.nn.sigmoid(i_r + h_r)
        z = jax.nn.sigmoid(i_z + h_z)
        n = jnp.tanh(i_n + r * h_n)
        h_new = (1.0 - z) * n + z * h
        return h_new, h_new

    h0 = jnp.zeros((x.shape[1], H), jnp.float32)
    h_last, ys = jax.lax.scan(step, h0, x.astype(jnp.float32))
    return ys, h_last[None]


if __name__ == "__main__":
    # Small lane-friendly shapes: T=12 timesteps, B=8, I=H=128. block_t=8 is passed
    # explicitly (only for this tiny test) so the grid has 2 time blocks and the
    # carried-state + time-padding paths are exercised; the production default is 128.
    T, B, I, H = 12, 8, 128, 128
    key = jax.random.PRNGKey(0)
    kx, k1, k2, k3, k4 = jax.random.split(key, 5)

    scale = 1.0 / jnp.sqrt(jnp.float32(H))   # PyTorch-style uniform(-1/sqrt(H), 1/sqrt(H))
    x = jax.random.normal(kx, (T, B, I), jnp.float32)
    w_ih = jax.random.uniform(k1, (3 * H, I), jnp.float32, -scale, scale)
    w_hh = jax.random.uniform(k2, (3 * H, H), jnp.float32, -scale, scale)
    b_ih = jax.random.uniform(k3, (3 * H,), jnp.float32, -scale, scale)
    b_hh = jax.random.uniform(k4, (3 * H,), jnp.float32, -scale, scale)

    out, h_n = gru_pallas(x, w_ih, w_hh, b_ih, b_hh, block_t=8)
    out = jax.block_until_ready(out)
    h_n = jax.block_until_ready(h_n)

    out_ref, h_n_ref = gru_reference(x, w_ih, w_hh, b_ih, b_hh)
    assert out.shape == (T, B, H) and h_n.shape == (1, B, H)
    # bf16 MXU matmuls + bf16 outputs vs f32 reference -> loose tolerance.
    assert jnp.allclose(out.astype(jnp.float32), out_ref, atol=3e-2, rtol=3e-2)
    assert jnp.allclose(h_n.astype(jnp.float32), h_n_ref, atol=3e-2, rtol=3e-2)

    print("KERNEL_OK")
</pallas_src>

<mosaic_0001>
module attributes {stable_mosaic.version = 11 : i64} {
  func.func @gru_kernel(%arg0: i32, %arg1: i32, %arg2: memref<8x8x128xf32, #tpu.memory_space<vmem>>, %arg3: memref<128x384xbf16, #tpu.memory_space<vmem>>, %arg4: memref<128x384xbf16, #tpu.memory_space<vmem>>, %arg5: memref<1x384xf32, #tpu.memory_space<vmem>>, %arg6: memref<1x128xf32, #tpu.memory_space<vmem>>, %arg7: memref<8x8x128xbf16, #tpu.memory_space<vmem>>, %arg8: memref<8x128xf32, #tpu.memory_space<vmem>>, %arg9: memref<64x384xf32, #tpu.memory_space<vmem>>) attributes {dimension_semantics = [#tpu.dimension_semantics<parallel>, #tpu.dimension_semantics<arbitrary>], iteration_bounds = array<i64: 1, 2>, scalar_prefetch = 0 : i64, scratch_operands = 2 : i64, tpu.core_type = #tpu.core_type<tc>, window_params = [{transform_indices = @transform_0, window_bounds = array<i64: 8, 8, 128>}, {pipeline_mode = #tpu.pipeline_mode<synchronous>, transform_indices = @transform_1, window_bounds = array<i64: 128, 384>}, {pipeline_mode = #tpu.pipeline_mode<synchronous>, transform_indices = @transform_2, window_bounds = array<i64: 128, 384>}, {pipeline_mode = #tpu.pipeline_mode<synchronous>, transform_indices = @transform_3, window_bounds = array<i64: 1, 384>}, {pipeline_mode = #tpu.pipeline_mode<synchronous>, transform_indices = @transform_4, window_bounds = array<i64: 1, 128>}, {transform_indices = @transform_5, window_bounds = array<i64: 8, 8, 128>}]} {
    %c0_i32 = arith.constant 0 : i32
    %0 = arith.cmpi eq, %arg1, %c0_i32 : i32
    %1 = arith.extui %0 : i1 to i32
    %c0_i32_0 = arith.constant 0 : i32
    %2 = arith.cmpi ne, %1, %c0_i32_0 : i32
    scf.if %2 {
      %cst_74 = arith.constant 0.000000e+00 : f32
      %306 = vector.broadcast %cst_74 : f32 to vector<8x128xf32>
      %c0_75 = arith.constant 0 : index
      %c0_76 = arith.constant 0 : index
      %307 = vector.load %arg8[%c0_75, %c0_76] : memref<8x128xf32, #tpu.memory_space<vmem>>, vector<8x128xf32>
      tpu.vector_store %arg8[%c0_75, %c0_76], %306 {strides = array<i32>} : memref<8x128xf32, #tpu.memory_space<vmem>>, vector<8x128xf32>,
    } else {
    }
    %c0 = arith.constant 0 : index
    %c0_1 = arith.constant 0 : index
    %c0_2 = arith.constant 0 : index
    %3 = vector.load %arg2[%c0, %c0_1, %c0_2] : memref<8x8x128xf32, #tpu.memory_space<vmem>>, vector<8x8x128xf32>
    %4 = vector.shape_cast %3 : vector<8x8x128xf32> to vector<64x128xf32>
    %5 = arith.truncf %4 : vector<64x128xf32> to vector<64x128xbf16>
    %c0_3 = arith.constant 0 : index
    %c0_4 = arith.constant 0 : index
    %6 = vector.load %arg3[%c0_3, %c0_4] : memref<128x384xbf16, #tpu.memory_space<vmem>>, vector<128x384xbf16>
    %cst = arith.constant dense<0.000000e+00> : vector<64x384xf32>
    %7 = tpu.matmul %5, %6, %cst {dimension_numbers = #tpu.dot_dimension_numbers<[1], [0], [0], [1], [0, 0, 1, 1], [], []>} : vector<64x128xbf16>, vector<128x384xbf16>, vector<64x384xf32> -> vector<64x384xf32>
    %c0_5 = arith.constant 0 : index
    %c0_6 = arith.constant 0 : index
    %8 = vector.load %arg5[%c0_5, %c0_6] : memref<1x384xf32, #tpu.memory_space<vmem>>, vector<1x384xf32>
    %9 = vector.broadcast %8 : vector<1x384xf32> to vector<64x384xf32>
    %10 = arith.addf %7, %9 : vector<64x384xf32>
    %c0_7 = arith.constant 0 : index
    %c0_8 = arith.constant 0 : index
    %11 = vector.load %arg9[%c0_7, %c0_8] : memref<64x384xf32, #tpu.memory_space<vmem>>, vector<64x384xf32>
    tpu.vector_store %arg9[%c0_7, %c0_8], %10 {strides = array<i32>} : memref<64x384xf32, #tpu.memory_space<vmem>>, vector<64x384xf32>,
    %c0_9 = arith.constant 0 : index
    %c0_10 = arith.constant 0 : index
    %12 = vector.load %arg4[%c0_9, %c0_10] : memref<128x384xbf16, #tpu.memory_space<vmem>>, vector<128x384xbf16>
    %c0_11 = arith.constant 0 : index
    %c0_12 = arith.constant 0 : index
    %13 = vector.load %arg6[%c0_11, %c0_12] : memref<1x128xf32, #tpu.memory_space<vmem>>, vector<1x128xf32>
    %14 = vector.shape_cast %13 : vector<1x128xf32> to vector<1x128xf32>
    %15 = vector.broadcast %14 : vector<1x128xf32> to vector<8x128xf32>
    %c0_13 = arith.constant 0 : index
    %c0_14 = arith.constant 0 : index
    %16 = vector.load %arg8[%c0_13, %c0_14] : memref<8x128xf32, #tpu.memory_space<vmem>>, vector<8x128xf32>
    %c0_i32_15 = arith.constant 0 : i32
    %c8_i32 = arith.constant 8 : i32
    %17 = arith.muli %c0_i32_15, %c8_i32 : i32
    %18 = tpu.assume_multiple %17, 8 : i32
    %19 = arith.index_cast %18 : i32 to index
    %c0_16 = arith.constant 0 : index
    %20 = vector.load %arg9[%19, %c0_16] : memref<64x384xf32, #tpu.memory_space<vmem>>, vector<8x384xf32>
    %21 = arith.truncf %16 : vector<8x128xf32> to vector<8x128xbf16>
    %cst_17 = arith.constant dense<0.000000e+00> : vector<8x384xf32>
    %22 = tpu.matmul %21, %12, %cst_17 {dimension_numbers = #tpu.dot_dimension_numbers<[1], [0], [0], [1], [0, 0, 1, 1], [], []>} : vector<8x128xbf16>, vector<128x384xbf16>, vector<8x384xf32> -> vector<8x384xf32>
    %23 = vector.extract_strided_slice %20 {offsets = [0, 0], sizes = [8, 128], strides = [1, 1]} : vector<8x384xf32> to vector<8x128xf32>
    %24 = vector.extract_strided_slice %22 {offsets = [0, 0], sizes = [8, 128], strides = [1, 1]} : vector<8x384xf32> to vector<8x128xf32>
    %25 = arith.addf %23, %24 : vector<8x128xf32>
    %26 = arith.negf %25 : vector<8x128xf32>
    %27 = math.exp %26 : vector<8x128xf32>
    %cst_18 = arith.constant 1.000000e+00 : f32
    %28 = vector.broadcast %cst_18 : f32 to vector<8x128xf32>
    %29 = arith.addf %28, %27 : vector<8x128xf32>
    %30 = arith.divf %28, %29 : vector<8x128xf32>
    %31 = vector.extract_strided_slice %20 {offsets = [0, 128], sizes = [8, 128], strides = [1, 1]} : vector<8x384xf32> to vector<8x128xf32>
    %32 = vector.extract_strided_slice %22 {offsets = [0, 128], sizes = [8, 128], strides = [1, 1]} : vector<8x384xf32> to vector<8x128xf32>
    %33 = arith.addf %31, %32 : vector<8x128xf32>
    %34 = arith.negf %33 : vector<8x128xf32>
    %35 = math.exp %34 : vector<8x128xf32>
    %cst_19 = arith.constant 1.000000e+00 : f32
    %36 = vector.broadcast %cst_19 : f32 to vector<8x128xf32>
    %37 = arith.addf %36, %35 : vector<8x128xf32>
    %38 = arith.divf %36, %37 : vector<8x128xf32>
    %39 = vector.extract_strided_slice %20 {offsets = [0, 256], sizes = [8, 128], strides = [1, 1]} : vector<8x384xf32> to vector<8x128xf32>
    %40 = vector.extract_strided_slice %22 {offsets = [0, 256], sizes = [8, 128], strides = [1, 1]} : vector<8x384xf32> to vector<8x128xf32>
    %41 = arith.addf %40, %15 : vector<8x128xf32>
    %42 = arith.mulf %30, %41 : vector<8x128xf32>
    %43 = arith.addf %39, %42 : vector<8x128xf32>
    %44 = math.tanh %43 : vector<8x128xf32>
    %45 = arith.subf %16, %44 : vector<8x128xf32>
    %46 = arith.mulf %38, %45 : vector<8x128xf32>
    %47 = arith.addf %44, %46 : vector<8x128xf32>
    %48 = arith.truncf %47 : vector<8x128xf32> to vector<8x128xbf16>
    %49 = arith.index_cast %c0_i32_15 : i32 to index
    %c0_20 = arith.constant 0 : index
    %c0_21 = arith.constant 0 : index
    %50 = vector.load %arg7[%49, %c0_20, %c0_21] : memref<8x8x128xbf16, #tpu.memory_space<vmem>>, vector<1x8x128xbf16>
    %51 = vector.shape_cast %50 : vector<1x8x128xbf16> to vector<8x128xbf16>
    %52 = vector.shape_cast %48 : vector<8x128xbf16> to vector<1x8x128xbf16>
    tpu.vector_store %arg7[%49, %c0_20, %c0_21], %52 {strides = array<i32>} : memref<8x8x128xbf16, #tpu.memory_space<vmem>>, vector<1x8x128xbf16>,
    %c1_i32 = arith.constant 1 : i32
    %c8_i32_22 = arith.constant 8 : i32
    %53 = arith.muli %c1_i32, %c8_i32_22 : i32
    %54 = tpu.assume_multiple %53, 8 : i32
    %55 = arith.index_cast %54 : i32 to index
    %c0_23 = arith.constant 0 : index
    %56 = vector.load %arg9[%55, %c0_23] : memref<64x384xf32, #tpu.memory_space<vmem>>, vector<8x384xf32>
    %57 = arith.truncf %47 : vector<8x128xf32> to vector<8x128xbf16>
    %cst_24 = arith.constant dense<0.000000e+00> : vector<8x384xf32>
    %58 = tpu.matmul %57, %12, %cst_24 {dimension_numbers = #tpu.dot_dimension_numbers<[1], [0], [0], [1], [0, 0, 1, 1], [], []>} : vector<8x128xbf16>, vector<128x384xbf16>, vector<8x384xf32> -> vector<8x384xf32>
    %59 = vector.extract_strided_slice %56 {offsets = [0, 0], sizes = [8, 128], strides = [1, 1]} : vector<8x384xf32> to vector<8x128xf32>
    %60 = vector.extract_strided_slice %58 {offsets = [0, 0], sizes = [8, 128], strides = [1, 1]} : vector<8x384xf32> to vector<8x128xf32>
    %61 = arith.addf %59, %60 : vector<8x128xf32>
    %62 = arith.negf %61 : vector<8x128xf32>
    %63 = math.exp %62 : vector<8x128xf32>
    %cst_25 = arith.constant 1.000000e+00 : f32
    %64 = vector.broadcast %cst_25 : f32 to vector<8x128xf32>
    %65 = arith.addf %64, %63 : vector<8x128xf32>
    %66 = arith.divf %64, %65 : vector<8x128xf32>
    %67 = vector.extract_strided_slice %56 {offsets = [0, 128], sizes = [8, 128], strides = [1, 1]} : vector<8x384xf32> to vector<8x128xf32>
    %68 = vector.extract_strided_slice %58 {offsets = [0, 128], sizes = [8, 128], strides = [1, 1]} : vector<8x384xf32> to vector<8x128xf32>
    %69 = arith.addf %67, %68 : vector<8x128xf32>
    %70 = arith.negf %69 : vector<8x128xf32>
    %71 = math.exp %70 : vector<8x128xf32>
    %cst_26 = arith.constant 1.000000e+00 : f32
    %72 = vector.broadcast %cst_26 : f32 to vector<8x128xf32>
    %73 = arith.addf %72, %71 : vector<8x128xf32>
    %74 = arith.divf %72, %73 : vector<8x128xf32>
    %75 = vector.extract_strided_slice %56 {offsets = [0, 256], sizes = [8, 128], strides = [1, 1]} : vector<8x384xf32> to vector<8x128xf32>
    %76 = vector.extract_strided_slice %58 {offsets = [0, 256], sizes = [8, 128], strides = [1, 1]} : vector<8x384xf32> to vector<8x128xf32>
    %77 = arith.addf %76, %15 : vector<8x128xf32>
    %78 = arith.mulf %66, %77 : vector<8x128xf32>
    %79 = arith.addf %75, %78 : vector<8x128xf32>
    %80 = math.tanh %79 : vector<8x128xf32>
    %81 = arith.subf %47, %80 : vector<8x128xf32>
    %82 = arith.mulf %74, %81 : vector<8x128xf32>
    %83 = arith.addf %80, %82 : vector<8x128xf32>
    %84 = arith.truncf %83 : vector<8x128xf32> to vector<8x128xbf16>
    %85 = arith.index_cast %c1_i32 : i32 to index
    %c0_27 = arith.constant 0 : index
    %c0_28 = arith.constant 0 : index
    %86 = vector.load %arg7[%85, %c0_27, %c0_28] : memref<8x8x128xbf16, #tpu.memory_space<vmem>>, vector<1x8x128xbf16>
    %87 = vector.shape_cast %86 : vector<1x8x128xbf16> to vector<8x128xbf16>
    %88 = vector.shape_cast %84 : vector<8x128xbf16> to vector<1x8x128xbf16>
    tpu.vector_store %arg7[%85, %c0_27, %c0_28], %88 {strides = array<i32>} : memref<8x8x128xbf16, #tpu.memory_space<vmem>>, vector<1x8x128xbf16>,
    %c2_i32 = arith.constant 2 : i32
    %c8_i32_29 = arith.constant 8 : i32
    %89 = arith.muli %c2_i32, %c8_i32_29 : i32
    %90 = tpu.assume_multiple %89, 8 : i32
    %91 = arith.index_cast %90 : i32 to index
    %c0_30 = arith.constant 0 : index
    %92 = vector.load %arg9[%91, %c0_30] : memref<64x384xf32, #tpu.memory_space<vmem>>, vector<8x384xf32>
    %93 = arith.truncf %83 : vector<8x128xf32> to vector<8x128xbf16>
    %cst_31 = arith.constant dense<0.000000e+00> : vector<8x384xf32>
    %94 = tpu.matmul %93, %12, %cst_31 {dimension_numbers = #tpu.dot_dimension_numbers<[1], [0], [0], [1], [0, 0, 1, 1], [], []>} : vector<8x128xbf16>, vector<128x384xbf16>, vector<8x384xf32> -> vector<8x384xf32>
    %95 = vector.extract_strided_slice %92 {offsets = [0, 0], sizes = [8, 128], strides = [1, 1]} : vector<8x384xf32> to vector<8x128xf32>
    %96 = vector.extract_strided_slice %94 {offsets = [0, 0], sizes = [8, 128], strides = [1, 1]} : vector<8x384xf32> to vector<8x128xf32>
    %97 = arith.addf %95, %96 : vector<8x128xf32>
    %98 = arith.negf %97 : vector<8x128xf32>
    %99 = math.exp %98 : vector<8x128xf32>
    %cst_32 = arith.constant 1.000000e+00 : f32
    %100 = vector.broadcast %cst_32 : f32 to vector<8x128xf32>
    %101 = arith.addf %100, %99 : vector<8x128xf32>
    %102 = arith.divf %100, %101 : vector<8x128xf32>
    %103 = vector.extract_strided_slice %92 {offsets = [0, 128], sizes = [8, 128], strides = [1, 1]} : vector<8x384xf32> to vector<8x128xf32>
    %104 = vector.extract_strided_slice %94 {offsets = [0, 128], sizes = [8, 128], strides = [1, 1]} : vector<8x384xf32> to vector<8x128xf32>
    %105 = arith.addf %103, %104 : vector<8x128xf32>
    %106 = arith.negf %105 : vector<8x128xf32>
    %107 = math.exp %106 : vector<8x128xf32>
    %cst_33 = arith.constant 1.000000e+00 : f32
    %108 = vector.broadcast %cst_33 : f32 to vector<8x128xf32>
    %109 = arith.addf %108, %107 : vector<8x128xf32>
    %110 = arith.divf %108, %109 : vector<8x128xf32>
    %111 = vector.extract_strided_slice %92 {offsets = [0, 256], sizes = [8, 128], strides = [1, 1]} : vector<8x384xf32> to vector<8x128xf32>
    %112 = vector.extract_strided_slice %94 {offsets = [0, 256], sizes = [8, 128], strides = [1, 1]} : vector<8x384xf32> to vector<8x128xf32>
    %113 = arith.addf %112, %15 : vector<8x128xf32>
    %114 = arith.mulf %102, %113 : vector<8x128xf32>
    %115 = arith.addf %111, %114 : vector<8x128xf32>
    %116 = math.tanh %115 : vector<8x128xf32>
    %117 = arith.subf %83, %116 : vector<8x128xf32>
    %118 = arith.mulf %110, %117 : vector<8x128xf32>
    %119 = arith.addf %116, %118 : vector<8x128xf32>
    %120 = arith.truncf %119 : vector<8x128xf32> to vector<8x128xbf16>
    %121 = arith.index_cast %c2_i32 : i32 to index
    %c0_34 = arith.constant 0 : index
    %c0_35 = arith.constant 0 : index
    %122 = vector.load %arg7[%121, %c0_34, %c0_35] : memref<8x8x128xbf16, #tpu.memory_space<vmem>>, vector<1x8x128xbf16>
    %123 = vector.shape_cast %122 : vector<1x8x128xbf16> to vector<8x128xbf16>
    %124 = vector.shape_cast %120 : vector<8x128xbf16> to vector<1x8x128xbf16>
    tpu.vector_store %arg7[%121, %c0_34, %c0_35], %124 {strides = array<i32>} : memref<8x8x128xbf16, #tpu.memory_space<vmem>>, vector<1x8x128xbf16>,
    %c3_i32 = arith.constant 3 : i32
    %c8_i32_36 = arith.constant 8 : i32
    %125 = arith.muli %c3_i32, %c8_i32_36 : i32
    %126 = tpu.assume_multiple %125, 8 : i32
    %127 = arith.index_cast %126 : i32 to index
    %c0_37 = arith.constant 0 : index
    %128 = vector.load %arg9[%127, %c0_37] : memref<64x384xf32, #tpu.memory_space<vmem>>, vector<8x384xf32>
    %129 = arith.truncf %119 : vector<8x128xf32> to vector<8x128xbf16>
    %cst_38 = arith.constant dense<0.000000e+00> : vector<8x384xf32>
    %130 = tpu.matmul %129, %12, %cst_38 {dimension_numbers = #tpu.dot_dimension_numbers<[1], [0], [0], [1], [0, 0, 1, 1], [], []>} : vector<8x128xbf16>, vector<128x384xbf16>, vector<8x384xf32> -> vector<8x384xf32>
    %131 = vector.extract_strided_slice %128 {offsets = [0, 0], sizes = [8, 128], strides = [1, 1]} : vector<8x384xf32> to vector<8x128xf32>
    %132 = vector.extract_strided_slice %130 {offsets = [0, 0], sizes = [8, 128], strides = [1, 1]} : vector<8x384xf32> to vector<8x128xf32>
    %133 = arith.addf %131, %132 : vector<8x128xf32>
    %134 = arith.negf %133 : vector<8x128xf32>
    %135 = math.exp %134 : vector<8x128xf32>
    %cst_39 = arith.constant 1.000000e+00 : f32
    %136 = vector.broadcast %cst_39 : f32 to vector<8x128xf32>
    %137 = arith.addf %136, %135 : vector<8x128xf32>
    %138 = arith.divf %136, %137 : vector<8x128xf32>
    %139 = vector.extract_strided_slice %128 {offsets = [0, 128], sizes = [8, 128], strides = [1, 1]} : vector<8x384xf32> to vector<8x128xf32>
    %140 = vector.extract_strided_slice %130 {offsets = [0, 128], sizes = [8, 128], strides = [1, 1]} : vector<8x384xf32> to vector<8x128xf32>
    %141 = arith.addf %139, %140 : vector<8x128xf32>
    %142 = arith.negf %141 : vector<8x128xf32>
    %143 = math.exp %142 : vector<8x128xf32>
    %cst_40 = arith.constant 1.000000e+00 : f32
    %144 = vector.broadcast %cst_40 : f32 to vector<8x128xf32>
    %145 = arith.addf %144, %143 : vector<8x128xf32>
    %146 = arith.divf %144, %145 : vector<8x128xf32>
    %147 = vector.extract_strided_slice %128 {offsets = [0, 256], sizes = [8, 128], strides = [1, 1]} : vector<8x384xf32> to vector<8x128xf32>
    %148 = vector.extract_strided_slice %130 {offsets = [0, 256], sizes = [8, 128], strides = [1, 1]} : vector<8x384xf32> to vector<8x128xf32>
    %149 = arith.addf %148, %15 : vector<8x128xf32>
    %150 = arith.mulf %138, %149 : vector<8x128xf32>
    %151 = arith.addf %147, %150 : vector<8x128xf32>
    %152 = math.tanh %151 : vector<8x128xf32>
    %153 = arith.subf %119, %152 : vector<8x128xf32>
    %154 = arith.mulf %146, %153 : vector<8x128xf32>
    %155 = arith.addf %152, %154 : vector<8x128xf32>
    %156 = arith.truncf %155 : vector<8x128xf32> to vector<8x128xbf16>
    %157 = arith.index_cast %c3_i32 : i32 to index
    %c0_41 = arith.constant 0 : index
    %c0_42 = arith.constant 0 : index
    %158 = vector.load %arg7[%157, %c0_41, %c0_42] : memref<8x8x128xbf16, #tpu.memory_space<vmem>>, vector<1x8x128xbf16>
    %159 = vector.shape_cast %158 : vector<1x8x128xbf16> to vector<8x128xbf16>
    %160 = vector.shape_cast %156 : vector<8x128xbf16> to vector<1x8x128xbf16>
    tpu.vector_store %arg7[%157, %c0_41, %c0_42], %160 {strides = array<i32>} : memref<8x8x128xbf16, #tpu.memory_space<vmem>>, vector<1x8x128xbf16>,
    %c4_i32 = arith.constant 4 : i32
    %c8_i32_43 = arith.constant 8 : i32
    %161 = arith.muli %c4_i32, %c8_i32_43 : i32
    %162 = tpu.assume_multiple %161, 8 : i32
    %163 = arith.index_cast %162 : i32 to index
    %c0_44 = arith.constant 0 : index
    %164 = vector.load %arg9[%163, %c0_44] : memref<64x384xf32, #tpu.memory_space<vmem>>, vector<8x384xf32>
    %165 = arith.truncf %155 : vector<8x128xf32> to vector<8x128xbf16>
    %cst_45 = arith.constant dense<0.000000e+00> : vector<8x384xf32>
    %166 = tpu.matmul %165, %12, %cst_45 {dimension_numbers = #tpu.dot_dimension_numbers<[1], [0], [0], [1], [0, 0, 1, 1], [], []>} : vector<8x128xbf16>, vector<128x384xbf16>, vector<8x384xf32> -> vector<8x384xf32>
    %167 = vector.extract_strided_slice %164 {offsets = [0, 0], sizes = [8, 128], strides = [1, 1]} : vector<8x384xf32> to vector<8x128xf32>
    %168 = vector.extract_strided_slice %166 {offsets = [0, 0], sizes = [8, 128], strides = [1, 1]} : vector<8x384xf32> to vector<8x128xf32>
    %169 = arith.addf %167, %168 : vector<8x128xf32>
    %170 = arith.negf %169 : vector<8x128xf32>
    %171 = math.exp %170 : vector<8x128xf32>
    %cst_46 = arith.constant 1.000000e+00 : f32
    %172 = vector.broadcast %cst_46 : f32 to vector<8x128xf32>
    %173 = arith.addf %172, %171 : vector<8x128xf32>
    %174 = arith.divf %172, %173 : vector<8x128xf32>
    %175 = vector.extract_strided_slice %164 {offsets = [0, 128], sizes = [8, 128], strides = [1, 1]} : vector<8x384xf32> to vector<8x128xf32>
    %176 = vector.extract_strided_slice %166 {offsets = [0, 128], sizes = [8, 128], strides = [1, 1]} : vector<8x384xf32> to vector<8x128xf32>
    %177 = arith.addf %175, %176 : vector<8x128xf32>
    %178 = arith.negf %177 : vector<8x128xf32>
    %179 = math.exp %178 : vector<8x128xf32>
    %cst_47 = arith.constant 1.000000e+00 : f32
    %180 = vector.broadcast %cst_47 : f32 to vector<8x128xf32>
    %181 = arith.addf %180, %179 : vector<8x128xf32>
    %182 = arith.divf %180, %181 : vector<8x128xf32>
    %183 = vector.extract_strided_slice %164 {offsets = [0, 256], sizes = [8, 128], strides = [1, 1]} : vector<8x384xf32> to vector<8x128xf32>
    %184 = vector.extract_strided_slice %166 {offsets = [0, 256], sizes = [8, 128], strides = [1, 1]} : vector<8x384xf32> to vector<8x128xf32>
    %185 = arith.addf %184, %15 : vector<8x128xf32>
    %186 = arith.mulf %174, %185 : vector<8x128xf32>
    %187 = arith.addf %183, %186 : vector<8x128xf32>
    %188 = math.tanh %187 : vector<8x128xf32>
    %189 = arith.subf %155, %188 : vector<8x128xf32>
    %190 = arith.mulf %182, %189 : vector<8x128xf32>
    %191 = arith.addf %188, %190 : vector<8x128xf32>
    %192 = arith.truncf %191 : vector<8x128xf32> to vector<8x128xbf16>
    %193 = arith.index_cast %c4_i32 : i32 to index
    %c0_48 = arith.constant 0 : index
    %c0_49 = arith.constant 0 : index
    %194 = vector.load %arg7[%193, %c0_48, %c0_49] : memref<8x8x128xbf16, #tpu.memory_space<vmem>>, vector<1x8x128xbf16>
    %195 = vector.shape_cast %194 : vector<1x8x128xbf16> to vector<8x128xbf16>
    %196 = vector.shape_cast %192 : vector<8x128xbf16> to vector<1x8x128xbf16>
    tpu.vector_store %arg7[%193, %c0_48, %c0_49], %196 {strides = array<i32>} : memref<8x8x128xbf16, #tpu.memory_space<vmem>>, vector<1x8x128xbf16>,
    %c5_i32 = arith.constant 5 : i32
    %c8_i32_50 = arith.constant 8 : i32
    %197 = arith.muli %c5_i32, %c8_i32_50 : i32
    %198 = tpu.assume_multiple %197, 8 : i32
    %199 = arith.index_cast %198 : i32 to index
    %c0_51 = arith.constant 0 : index
    %200 = vector.load %arg9[%199, %c0_51] : memref<64x384xf32, #tpu.memory_space<vmem>>, vector<8x384xf32>
    %201 = arith.truncf %191 : vector<8x128xf32> to vector<8x128xbf16>
    %cst_52 = arith.constant dense<0.000000e+00> : vector<8x384xf32>
    %202 = tpu.matmul %201, %12, %cst_52 {dimension_numbers = #tpu.dot_dimension_numbers<[1], [0], [0], [1], [0, 0, 1, 1], [], []>} : vector<8x128xbf16>, vector<128x384xbf16>, vector<8x384xf32> -> vector<8x384xf32>
    %203 = vector.extract_strided_slice %200 {offsets = [0, 0], sizes = [8, 128], strides = [1, 1]} : vector<8x384xf32> to vector<8x128xf32>
    %204 = vector.extract_strided_slice %202 {offsets = [0, 0], sizes = [8, 128], strides = [1, 1]} : vector<8x384xf32> to vector<8x128xf32>
    %205 = arith.addf %203, %204 : vector<8x128xf32>
    %206 = arith.negf %205 : vector<8x128xf32>
    %207 = math.exp %206 : vector<8x128xf32>
    %cst_53 = arith.constant 1.000000e+00 : f32
    %208 = vector.broadcast %cst_53 : f32 to vector<8x128xf32>
    %209 = arith.addf %208, %207 : vector<8x128xf32>
    %210 = arith.divf %208, %209 : vector<8x128xf32>
    %211 = vector.extract_strided_slice %200 {offsets = [0, 128], sizes = [8, 128], strides = [1, 1]} : vector<8x384xf32> to vector<8x128xf32>
    %212 = vector.extract_strided_slice %202 {offsets = [0, 128], sizes = [8, 128], strides = [1, 1]} : vector<8x384xf32> to vector<8x128xf32>
    %213 = arith.addf %211, %212 : vector<8x128xf32>
    %214 = arith.negf %213 : vector<8x128xf32>
    %215 = math.exp %214 : vector<8x128xf32>
    %cst_54 = arith.constant 1.000000e+00 : f32
    %216 = vector.broadcast %cst_54 : f32 to vector<8x128xf32>
    %217 = arith.addf %216, %215 : vector<8x128xf32>
    %218 = arith.divf %216, %217 : vector<8x128xf32>
    %219 = vector.extract_strided_slice %200 {offsets = [0, 256], sizes = [8, 128], strides = [1, 1]} : vector<8x384xf32> to vector<8x128xf32>
    %220 = vector.extract_strided_slice %202 {offsets = [0, 256], sizes = [8, 128], strides = [1, 1]} : vector<8x384xf32> to vector<8x128xf32>
    %221 = arith.addf %220, %15 : vector<8x128xf32>
    %222 = arith.mulf %210, %221 : vector<8x128xf32>
    %223 = arith.addf %219, %222 : vector<8x128xf32>
    %224 = math.tanh %223 : vector<8x128xf32>
    %225 = arith.subf %191, %224 : vector<8x128xf32>
    %226 = arith.mulf %218, %225 : vector<8x128xf32>
    %227 = arith.addf %224, %226 : vector<8x128xf32>
    %228 = arith.truncf %227 : vector<8x128xf32> to vector<8x128xbf16>
    %229 = arith.index_cast %c5_i32 : i32 to index
    %c0_55 = arith.constant 0 : index
    %c0_56 = arith.constant 0 : index
    %230 = vector.load %arg7[%229, %c0_55, %c0_56] : memref<8x8x128xbf16, #tpu.memory_space<vmem>>, vector<1x8x128xbf16>
    %231 = vector.shape_cast %230 : vector<1x8x128xbf16> to vector<8x128xbf16>
    %232 = vector.shape_cast %228 : vector<8x128xbf16> to vector<1x8x128xbf16>
    tpu.vector_store %arg7[%229, %c0_55, %c0_56], %232 {strides = array<i32>} : memref<8x8x128xbf16, #tpu.memory_space<vmem>>, vector<1x8x128xbf16>,
    %c6_i32 = arith.constant 6 : i32
    %c8_i32_57 = arith.constant 8 : i32
    %233 = arith.muli %c6_i32, %c8_i32_57 : i32
    %234 = tpu.assume_multiple %233, 8 : i32
    %235 = arith.index_cast %234 : i32 to index
    %c0_58 = arith.constant 0 : index
    %236 = vector.load %arg9[%235, %c0_58] : memref<64x384xf32, #tpu.memory_space<vmem>>, vector<8x384xf32>
    %237 = arith.truncf %227 : vector<8x128xf32> to vector<8x128xbf16>
    %cst_59 = arith.constant dense<0.000000e+00> : vector<8x384xf32>
    %238 = tpu.matmul %237, %12, %cst_59 {dimension_numbers = #tpu.dot_dimension_numbers<[1], [0], [0], [1], [0, 0, 1, 1], [], []>} : vector<8x128xbf16>, vector<128x384xbf16>, vector<8x384xf32> -> vector<8x384xf32>
    %239 = vector.extract_strided_slice %236 {offsets = [0, 0], sizes = [8, 128], strides = [1, 1]} : vector<8x384xf32> to vector<8x128xf32>
    %240 = vector.extract_strided_slice %238 {offsets = [0, 0], sizes = [8, 128], strides = [1, 1]} : vector<8x384xf32> to vector<8x128xf32>
    %241 = arith.addf %239, %240 : vector<8x128xf32>
    %242 = arith.negf %241 : vector<8x128xf32>
    %243 = math.exp %242 : vector<8x128xf32>
    %cst_60 = arith.constant 1.000000e+00 : f32
    %244 = vector.broadcast %cst_60 : f32 to vector<8x128xf32>
    %245 = arith.addf %244, %243 : vector<8x128xf32>
    %246 = arith.divf %244, %245 : vector<8x128xf32>
    %247 = vector.extract_strided_slice %236 {offsets = [0, 128], sizes = [8, 128], strides = [1, 1]} : vector<8x384xf32> to vector<8x128xf32>
    %248 = vector.extract_strided_slice %238 {offsets = [0, 128], sizes = [8, 128], strides = [1, 1]} : vector<8x384xf32> to vector<8x128xf32>
    %249 = arith.addf %247, %248 : vector<8x128xf32>
    %250 = arith.negf %249 : vector<8x128xf32>
    %251 = math.exp %250 : vector<8x128xf32>
    %cst_61 = arith.constant 1.000000e+00 : f32
    %252 = vector.broadcast %cst_61 : f32 to vector<8x128xf32>
    %253 = arith.addf %252, %251 : vector<8x128xf32>
    %254 = arith.divf %252, %253 : vector<8x128xf32>
    %255 = vector.extract_strided_slice %236 {offsets = [0, 256], sizes = [8, 128], strides = [1, 1]} : vector<8x384xf32> to vector<8x128xf32>
    %256 = vector.extract_strided_slice %238 {offsets = [0, 256], sizes = [8, 128], strides = [1, 1]} : vector<8x384xf32> to vector<8x128xf32>
    %257 = arith.addf %256, %15 : vector<8x128xf32>
    %258 = arith.mulf %246, %257 : vector<8x128xf32>
    %259 = arith.addf %255, %258 : vector<8x128xf32>
    %260 = math.tanh %259 : vector<8x128xf32>
    %261 = arith.subf %227, %260 : vector<8x128xf32>
    %262 = arith.mulf %254, %261 : vector<8x128xf32>
    %263 = arith.addf %260, %262 : vector<8x128xf32>
    %264 = arith.truncf %263 : vector<8x128xf32> to vector<8x128xbf16>
    %265 = arith.index_cast %c6_i32 : i32 to index
    %c0_62 = arith.constant 0 : index
    %c0_63 = arith.constant 0 : index
    %266 = vector.load %arg7[%265, %c0_62, %c0_63] : memref<8x8x128xbf16, #tpu.memory_space<vmem>>, vector<1x8x128xbf16>
    %267 = vector.shape_cast %266 : vector<1x8x128xbf16> to vector<8x128xbf16>
    %268 = vector.shape_cast %264 : vector<8x128xbf16> to vector<1x8x128xbf16>
    tpu.vector_store %arg7[%265, %c0_62, %c0_63], %268 {strides = array<i32>} : memref<8x8x128xbf16, #tpu.memory_space<vmem>>, vector<1x8x128xbf16>,
    %c7_i32 = arith.constant 7 : i32
    %c8_i32_64 = arith.constant 8 : i32
    %269 = arith.muli %c7_i32, %c8_i32_64 : i32
    %270 = tpu.assume_multiple %269, 8 : i32
    %271 = arith.index_cast %270 : i32 to index
    %c0_65 = arith.constant 0 : index
    %272 = vector.load %arg9[%271, %c0_65] : memref<64x384xf32, #tpu.memory_space<vmem>>, vector<8x384xf32>
    %273 = arith.truncf %263 : vector<8x128xf32> to vector<8x128xbf16>
    %cst_66 = arith.constant dense<0.000000e+00> : vector<8x384xf32>
    %274 = tpu.matmul %273, %12, %cst_66 {dimension_numbers = #tpu.dot_dimension_numbers<[1], [0], [0], [1], [0, 0, 1, 1], [], []>} : vector<8x128xbf16>, vector<128x384xbf16>, vector<8x384xf32> -> vector<8x384xf32>
    %275 = vector.extract_strided_slice %272 {offsets = [0, 0], sizes = [8, 128], strides = [1, 1]} : vector<8x384xf32> to vector<8x128xf32>
    %276 = vector.extract_strided_slice %274 {offsets = [0, 0], sizes = [8, 128], strides = [1, 1]} : vector<8x384xf32> to vector<8x128xf32>
    %277 = arith.addf %275, %276 : vector<8x128xf32>
    %278 = arith.negf %277 : vector<8x128xf32>
    %279 = math.exp %278 : vector<8x128xf32>
    %cst_67 = arith.constant 1.000000e+00 : f32
    %280 = vector.broadcast %cst_67 : f32 to vector<8x128xf32>
    %281 = arith.addf %280, %279 : vector<8x128xf32>
    %282 = arith.divf %280, %281 : vector<8x128xf32>
    %283 = vector.extract_strided_slice %272 {offsets = [0, 128], sizes = [8, 128], strides = [1, 1]} : vector<8x384xf32> to vector<8x128xf32>
    %284 = vector.extract_strided_slice %274 {offsets = [0, 128], sizes = [8, 128], strides = [1, 1]} : vector<8x384xf32> to vector<8x128xf32>
    %285 = arith.addf %283, %284 : vector<8x128xf32>
    %286 = arith.negf %285 : vector<8x128xf32>
    %287 = math.exp %286 : vector<8x128xf32>
    %cst_68 = arith.constant 1.000000e+00 : f32
    %288 = vector.broadcast %cst_68 : f32 to vector<8x128xf32>
    %289 = arith.addf %288, %287 : vector<8x128xf32>
    %290 = arith.divf %288, %289 : vector<8x128xf32>
    %291 = vector.extract_strided_slice %272 {offsets = [0, 256], sizes = [8, 128], strides = [1, 1]} : vector<8x384xf32> to vector<8x128xf32>
    %292 = vector.extract_strided_slice %274 {offsets = [0, 256], sizes = [8, 128], strides = [1, 1]} : vector<8x384xf32> to vector<8x128xf32>
    %293 = arith.addf %292, %15 : vector<8x128xf32>
    %294 = arith.mulf %282, %293 : vector<8x128xf32>
    %295 = arith.addf %291, %294 : vector<8x128xf32>
    %296 = math.tanh %295 : vector<8x128xf32>
    %297 = arith.subf %263, %296 : vector<8x128xf32>
    %298 = arith.mulf %290, %297 : vector<8x128xf32>
    %299 = arith.addf %296, %298 : vector<8x128xf32>
    %300 = arith.truncf %299 : vector<8x128xf32> to vector<8x128xbf16>
    %301 = arith.index_cast %c7_i32 : i32 to index
    %c0_69 = arith.constant 0 : index
    %c0_70 = arith.constant 0 : index
    %302 = vector.load %arg7[%301, %c0_69, %c0_70] : memref<8x8x128xbf16, #tpu.memory_space<vmem>>, vector<1x8x128xbf16>
    %303 = vector.shape_cast %302 : vector<1x8x128xbf16> to vector<8x128xbf16>
    %304 = vector.shape_cast %300 : vector<8x128xbf16> to vector<1x8x128xbf16>
    tpu.vector_store %arg7[%301, %c0_69, %c0_70], %304 {strides = array<i32>} : memref<8x8x128xbf16, #tpu.memory_space<vmem>>, vector<1x8x128xbf16>,
    %c8_i32_71 = arith.constant 8 : i32
    %c0_72 = arith.constant 0 : index
    %c0_73 = arith.constant 0 : index
    %305 = vector.load %arg8[%c0_72, %c0_73] : memref<8x128xf32, #tpu.memory_space<vmem>>, vector<8x128xf32>
    tpu.vector_store %arg8[%c0_72, %c0_73], %299 {strides = array<i32>} : memref<8x128xf32, #tpu.memory_space<vmem>>, vector<8x128xf32>,
    return
  }
  func.func @transform_0(%arg0: i32, %arg1: i32) -> (i32, i32, i32) {
    %c0_i32 = arith.constant 0 : i32
    %c0_i32_0 = arith.constant 0 : i32
    return %arg1, %arg0, %c0_i32 : i32, i32, i32
  }
  func.func @transform_1(%arg0: i32, %arg1: i32) -> (i32, i32) {
    %c0_i32 = arith.constant 0 : i32
    %c0_i32_0 = arith.constant 0 : i32
    %c0_i32_1 = arith.constant 0 : i32
    return %c0_i32, %c0_i32_0 : i32, i32
  }
  func.func @transform_2(%arg0: i32, %arg1: i32) -> (i32, i32) {
    %c0_i32 = arith.constant 0 : i32
    %c0_i32_0 = arith.constant 0 : i32
    %c0_i32_1 = arith.constant 0 : i32
    return %c0_i32, %c0_i32_0 : i32, i32
  }
  func.func @transform_3(%arg0: i32, %arg1: i32) -> (i32, i32) {
    %c0_i32 = arith.constant 0 : i32
    %c0_i32_0 = arith.constant 0 : i32
    %c0_i32_1 = arith.constant 0 : i32
    return %c0_i32, %c0_i32_0 : i32, i32
  }
  func.func @transform_4(%arg0: i32, %arg1: i32) -> (i32, i32) {
    %c0_i32 = arith.constant 0 : i32
    %c0_i32_0 = arith.constant 0 : i32
    %c0_i32_1 = arith.constant 0 : i32
    return %c0_i32, %c0_i32_0 : i32, i32
  }
  func.func @transform_5(%arg0: i32, %arg1: i32) -> (i32, i32, i32) {
    %c0_i32 = arith.constant 0 : i32
    %c0_i32_0 = arith.constant 0 : i32
    return %arg1, %arg0, %c0_i32 : i32, i32, i32
  }
}

</mosaic_0001>

<llo_original>
// kernel: tpu_custom_call.1
$region0: #{tpu_custom_call.1}
  #allocation0 [shape = 'u32[]', space=smem, size = 0x4, offset = 0x4, fixed_abs, tag = 'smem constant byte address 0x4 - core index']
  #allocation1 [shape = 'u32[72,128]{1,0:T(1,128)}', space=vmem, size = 0x9000, scoped, tag = 'internal scratch']
  #allocation2 [shape = 'f32[8,128]{1,0:T(8,128)}', space=vmem, size = 0x1000, scoped, tag = 'scratch operand']
  #allocation3 [shape = 'f32[64,384]{1,0:T(8,128)}', space=vmem, size = 0x18000, scoped, tag = 'scratch operand']
  %s0 = inlined_call_operand.hbm [shape: f32[16,8,128], index: 0, kind: input, shape index: {}]
  %s1 = inlined_call_operand.hbm [shape: bf16[128,384], index: 1, kind: input, shape index: {}]
  %s2 = inlined_call_operand.hbm [shape: bf16[128,384], index: 2, kind: input, shape index: {}]
  %s3 = inlined_call_operand.hbm [shape: f32[1,384], index: 3, kind: input, shape index: {}]
  %s4 = inlined_call_operand.vmem [shape: f32[1,128], index: 4, kind: input, shape index: {}]
  %s5 = inlined_call_operand.hbm [shape: bf16[16,8,128], index: 5, kind: output, shape index: {}]
  %s6 = sld [smem:[#allocation0]]
  $region73: #{tpu_custom_call.1} parent=0
    _
  %s8 = ssub.s32 1, %s6
  %s9 = scalar_select 0, %s8, %s6
  $region1: #{tpu_custom_call.1} parent=0
    #allocation4 [shape = 'u8[65536]{0}', space=vmem, size = 0x10000, scoped, tag = 'input window, operand 0']
    #allocation5 [shape = 's32[2]{0}', space=sflag, size = 0x8, scoped, tag = 'scoped memory for tpu_custom_call.1']
    #allocation6 [shape = 's32[2]{0}', space=sflag, size = 0x8, scoped, tag = 'scoped memory for tpu_custom_call.1']
    #allocation7 [shape = 'u8[98304]{0}', space=vmem, size = 0x18000, scoped, tag = 'input window, operand 1, single buffered']
    #allocation8 [shape = 's32[1]{0}', space=sflag, size = 0x4, scoped, tag = 'scoped memory for tpu_custom_call.1']
    #allocation9 [shape = 'u8[98304]{0}', space=vmem, size = 0x18000, scoped, tag = 'input window, operand 2, single buffered']
    #allocation10 [shape = 'u8[1536]{0}', space=vmem, size = 0x800, scoped, tag = 'input window, operand 3, single buffered']
    #allocation11 [shape = 's32[1]{0}', space=sflag, size = 0x4, scoped, tag = 'scoped memory for tpu_custom_call.1']
    #allocation12 [shape = 'u8[32768]{0}', space=vmem, size = 0x8000, scoped, tag = 'output window, operand 0']
    %10 = vsyncpa [#allocation5], 0
    %s11 = scalar_lea.sflag [#allocation5], 1
    %12 = vsyncpa %s11, 0
    %13 = vsyncpa [#allocation8], 0
    %14 = vsyncpa [#allocation11], 0
    %15 = vsyncpa [#allocation6], 0
    %s16 = scalar_lea.sflag [#allocation6], 1
    %17 = vsyncpa %s16, 0
    loop: start=0, step=1, limit=4
    $region2: #{tpu_custom_call.1} parent=1 // loop_pre_header
      _
    $region3: #{tpu_custom_call.1} parent=1 // loop_header
      %s19 = sphi 0, %s23
      %p20 = scmp.ge.s32.totalorder %s19, 4
      %s26 = sphi 0, %s38
      %s27 = sphi 0, %s34
      %s28 = sphi 0, %s26
      %s29 = sphi 0, %s27
      %s30 = sphi 0, %s28
      %s31 = sphi 0, %s29
      %s43 = sphi 0, %s45
      %s46 = sphi 0, %s43
      %s47 = sphi 0, %s46
      %s63 = sphi 0, %s47
      %s67 = sphi 0, %s67
      %s69 = sphi 0, %s67
      %s70 = sphi 0, %s69
      %s84 = sphi 0, %s70
      %s88 = sphi 0, %s88
      %s90 = sphi 0, %s88
      %s91 = sphi 0, %s90
      %s105 = sphi 0, %s91
      %s109 = sphi 0, %s109
      %s111 = sphi 0, %s109
      %s112 = sphi 0, %s111
      %s126 = sphi 0, %s112
      %s130 = sphi 0, %s130
      %s132 = sphi 0, %s130
      %s133 = sphi 0, %s132
      %s147 = sphi 0, %s133
      %s155 = sphi 0, %s157
      %s158 = sphi 0, %s155
      %s159 = sphi 0, %s158
      %s175 = sphi 0, %s159
    $region4: #{tpu_custom_call.1} parent=1 // loop_header_branch
      %22 = sbr.rel (%p20) target = $region8
    $region5: #{tpu_custom_call.1} parent=1 // loop_body
      %s24 = ssub.s32 %s19, 1
      %s25 = ssub.s32 %s19, 2
      %s32 = sadd.s32 1, %s27
      %p33 = scmp.ge.s32.totalorder %s32, 2
      %s34 = scalar_select %p33, 0, %s32
      %s35 = sadd.s32 1, %s26
      %s36 = scalar_select %p33, %s35, %s26
      %p37 = scmp.ge.s32.totalorder %s36, 1
      %s38 = scalar_select %p37, 0, %s36
      %s39 = ssub.s32 %s27, %s34
      %s40 = ssub.s32 %s26, %s38
      %s41 = sor.u32 %s39, %s40
      %p42 = scmp.eq.s32.totalorder %s41, 0
      %s44 = sadd.s32 %s43, 1
      %s45 = scalar_select %p42, %s43, %s44
      %p48 = pneg %p42
      %p49 = scmp.eq.s32.totalorder %s19, 1
      %p50 = por %p48, %p49
      %p51 = scmp.ne.s32.totalorder %s43, %s46
      %p52 = scmp.eq.s32.totalorder %s19, 0
      %p53 = por %p51, %p52
      %p54 = scmp.ne.s32.totalorder %s43, %s46
      %p55 = scmp.eq.s32.totalorder %s24, 1
      %p56 = por %p54, %p55
      %p57 = scmp.ne.s32.totalorder %s46, %s47
      %p58 = scmp.eq.s32.totalorder %s24, 0
      %p59 = por %p57, %p58
      %p60 = scmp.ne.s32.totalorder %s46, %s47
      %p61 = scmp.eq.s32.totalorder %s25, 1
      %p62 = por %p60, %p61
      %p64 = scmp.ne.s32.totalorder %s47, %s63
      %p65 = scmp.eq.s32.totalorder %s25, 0
      %p66 = por %p64, %p65
      %s68 = sadd.s32 %s67, 1
      %p71 = scmp.eq.s32.totalorder %s19, 1
      %p72 = scmp.ne.s32.totalorder %s67, %s69
      %p73 = scmp.eq.s32.totalorder %s19, 0
      %p74 = por %p72, %p73
      %p75 = scmp.ne.s32.totalorder %s67, %s69
      %p76 = scmp.eq.s32.totalorder %s24, 1
      %p77 = por %p75, %p76
      %p78 = scmp.ne.s32.totalorder %s69, %s70
      %p79 = scmp.eq.s32.totalorder %s24, 0
      %p80 = por %p78, %p79
      %p81 = scmp.ne.s32.totalorder %s69, %s70
      %p82 = scmp.eq.s32.totalorder %s25, 1
      %p83 = por %p81, %p82
      %p85 = scmp.ne.s32.totalorder %s70, %s84
      %p86 = scmp.eq.s32.totalorder %s25, 0
      %p87 = por %p85, %p86
      %s89 = sadd.s32 %s88, 1
      %p92 = scmp.eq.s32.totalorder %s19, 1
      %p93 = scmp.ne.s32.totalorder %s88, %s90
      %p94 = scmp.eq.s32.totalorder %s19, 0
      %p95 = por %p93, %p94
      %p96 = scmp.ne.s32.totalorder %s88, %s90
      %p97 = scmp.eq.s32.totalorder %s24, 1
      %p98 = por %p96, %p97
      %p99 = scmp.ne.s32.totalorder %s90, %s91
      %p100 = scmp.eq.s32.totalorder %s24, 0
      %p101 = por %p99, %p100
      %p102 = scmp.ne.s32.totalorder %s90, %s91
      %p103 = scmp.eq.s32.totalorder %s25, 1
      %p104 = por %p102, %p103
      %p106 = scmp.ne.s32.totalorder %s91, %s105
      %p107 = scmp.eq.s32.totalorder %s25, 0
      %p108 = por %p106, %p107
      %s110 = sadd.s32 %s109, 1
      %p113 = scmp.eq.s32.totalorder %s19, 1
      %p114 = scmp.ne.s32.totalorder %s109, %s111
      %p115 = scmp.eq.s32.totalorder %s19, 0
      %p116 = por %p114, %p115
      %p117 = scmp.ne.s32.totalorder %s109, %s111
      %p118 = scmp.eq.s32.totalorder %s24, 1
      %p119 = por %p117, %p118
      %p120 = scmp.ne.s32.totalorder %s111, %s112
      %p121 = scmp.eq.s32.totalorder %s24, 0
      %p122 = por %p120, %p121
      %p123 = scmp.ne.s32.totalorder %s111, %s112
      %p124 = scmp.eq.s32.totalorder %s25, 1
      %p125 = por %p123, %p124
      %p127 = scmp.ne.s32.totalorder %s112, %s126
      %p128 = scmp.eq.s32.totalorder %s25, 0
      %p129 = por %p127, %p128
      %s131 = sadd.s32 %s130, 1
      %p134 = scmp.eq.s32.totalorder %s19, 1
      %p135 = scmp.ne.s32.totalorder %s130, %s132
      %p136 = scmp.eq.s32.totalorder %s19, 0
      %p137 = por %p135, %p136
      %p138 = scmp.ne.s32.totalorder %s130, %s132
      %p139 = scmp.eq.s32.totalorder %s24, 1
      %p140 = por %p138, %p139
      %p141 = scmp.ne.s32.totalorder %s132, %s133
      %p142 = scmp.eq.s32.totalorder %s24, 0
      %p143 = por %p141, %p142
      %p144 = scmp.ne.s32.totalorder %s132, %s133
      %p145 = scmp.eq.s32.totalorder %s25, 1
      %p146 = por %p144, %p145
      %p148 = scmp.ne.s32.totalorder %s133, %s147
      %p149 = scmp.eq.s32.totalorder %s25, 0
      %p150 = por %p148, %p149
      %s151 = ssub.s32 %s27, %s34
      %s152 = ssub.s32 %s26, %s38
      %s153 = sor.u32 %s151, %s152
      %p154 = scmp.eq.s32.totalorder %s153, 0
      %s156 = sadd.s32 %s155, 1
      %s157 = scalar_select %p154, %s155, %s156
      %p160 = pneg %p154
      %p161 = scmp.eq.s32.totalorder %s19, 1
      %p162 = por %p160, %p161
      %p163 = scmp.ne.s32.totalorder %s155, %s158
      %p164 = scmp.eq.s32.totalorder %s19, 0
      %p165 = por %p163, %p164
      %p166 = scmp.ne.s32.totalorder %s155, %s158
      %p167 = scmp.eq.s32.totalorder %s24, 1
      %p168 = por %p166, %p167
      %p169 = scmp.ne.s32.totalorder %s158, %s159
      %p170 = scmp.eq.s32.totalorder %s24, 0
      %p171 = por %p169, %p170
      %p172 = scmp.ne.s32.totalorder %s158, %s159
      %p173 = scmp.eq.s32.totalorder %s25, 1
      %p174 = por %p172, %p173
      %p176 = scmp.ne.s32.totalorder %s159, %s175
      %p177 = scmp.eq.s32.totalorder %s25, 0
      %p178 = por %p176, %p177
      %p179 = scmp.le.s32.totalorder 1, %s19
      %p180 = scmp.lt.s32.totalorder %s19, 3
      %p181 = pnand %p179, %p180
      %p182 = pneg %p181
      // Predicated region
      $region9: #{tpu_custom_call.1} parent=5 // pred_check
        _
      $region10: #{tpu_custom_call.1} parent=5 // pred_check_branch
        %184 = sbr.rel (%p181) target = $region12
      $region11: #{tpu_custom_call.1} parent=5 // pred_region
        %s185 = ssub.s32 %s19, 1
        // Predicated region
        $region13: #{tpu_custom_call.1} parent=11 // pred_check
          %p186 = pneg %p80
        $region14: #{tpu_custom_call.1} parent=11 // pred_check_branch
          %188 = sbr.rel (%p186) target = $region16
        $region15: #{tpu_custom_call.1} parent=11 // pred_region
          %190 = vsyncadd [#allocation8], 0
          %s191 = sshll.u32 %s1, 4
          %s192 = int_to_ptr.hbm [resolvable:$true] %s191
          %s193 = sshll.u32 [#allocation7], 4
          %s194 = int_to_ptr.vmem [resolvable:$true] %s193
          %199 = dma.hbm_to_vmem [thread:$0]  %s192, 3072, %s194, [#allocation8], 192, 192, 12
        $region16: #{tpu_custom_call.1} parent=11 // pred_fallthru
          _
        // Predicated region
        $region17: #{tpu_custom_call.1} parent=11 // pred_check
          %p200 = pneg %p101
        $region18: #{tpu_custom_call.1} parent=11 // pred_check_branch
          %202 = sbr.rel (%p200) target = $region20
        $region19: #{tpu_custom_call.1} parent=11 // pred_region
          %204 = vsyncadd [#allocation8], 0
          %s205 = sshll.u32 %s2, 4
          %s206 = int_to_ptr.hbm [resolvable:$true] %s205
          %s207 = sshll.u32 [#allocation9], 4
          %s208 = int_to_ptr.vmem [resolvable:$true] %s207
          %213 = dma.hbm_to_vmem [thread:$0]  %s206, 3072, %s208, [#allocation8], 192, 192, 12
        $region20: #{tpu_custom_call.1} parent=11 // pred_fallthru
          _
        // Predicated region
        $region21: #{tpu_custom_call.1} parent=11 // pred_check
          %p214 = pneg %p122
        $region22: #{tpu_custom_call.1} parent=11 // pred_check_branch
          %216 = sbr.rel (%p214) target = $region24
        $region23: #{tpu_custom_call.1} parent=11 // pred_region
          %218 = vsyncadd [#allocation11], 0
          %s220 = sshll.u32 %s3, 4
          %s221 = int_to_ptr.hbm [resolvable:$true] %s220
          %s222 = sshll.u32 [#allocation10], 4
          %s223 = int_to_ptr.vmem [resolvable:$true] %s222
          %225 = dma.hbm_to_vmem [thread:$0]  %s221, 48, %s223, [#allocation11]
        $region24: #{tpu_custom_call.1} parent=11 // pred_fallthru
          _
        // Predicated region
        $region25: #{tpu_custom_call.1} parent=11 // pred_check
          %p226 = pneg %p143
        $region26: #{tpu_custom_call.1} parent=11 // pred_check_branch
          %228 = sbr.rel (%p226) target = $region28
        $region27: #{tpu_custom_call.1} parent=11 // pred_region
          _
        $region28: #{tpu_custom_call.1} parent=11 // pred_fallthru
          _
      $region12: #{tpu_custom_call.1} parent=5 // pred_fallthru
        _
      %p229 = scmp.lt.s32.totalorder %s19, 2
      // Predicated region
      $region29: #{tpu_custom_call.1} parent=5 // pred_check
        %p230 = pneg %p229
      $region30: #{tpu_custom_call.1} parent=5 // pred_check_branch
        %232 = sbr.rel (%p230) target = $region32
      $region31: #{tpu_custom_call.1} parent=5 // pred_region
        // Predicated region
        $region33: #{tpu_custom_call.1} parent=31 // pred_check
          %p233 = pneg %p53
        $region34: #{tpu_custom_call.1} parent=31 // pred_check_branch
          %235 = sbr.rel (%p233) target = $region36
        $region35: #{tpu_custom_call.1} parent=31 // pred_region
          %s236 = sand.u32 %s43, 1
          %s237 = scalar_lea.sflag [#allocation5], %s236
          %s238 = sand.u32 %s43, 1
          %s239 = smul.addr %s238, 64
          %s240 = scalar_lea.vmem [#allocation4], %s239
          %s241 = smul.u32 8, %s27
          %243 = vsyncadd %s237, 0
          %s244 = sadd.s32 %s26, %s241
          %s245 = smul.addr %s244, 8
          %s246 = scalar_lea.hbm %s0, %s245
          %s247 = sshll.u32 %s246, 4
          %s248 = int_to_ptr.hbm [resolvable:$true] %s247
          %s249 = sshll.u32 %s240, 4
          %s250 = int_to_ptr.vmem [resolvable:$true] %s249
          %255 = dma.hbm_to_vmem [thread:$0]  %s248, 1024, %s250, %s237, 128, 128, 8
        $region36: #{tpu_custom_call.1} parent=31 // pred_fallthru
          _
      $region32: #{tpu_custom_call.1} parent=5 // pred_fallthru
        _
      %p256 = scmp.le.s32.totalorder 1, %s19
      %p257 = scmp.lt.s32.totalorder %s19, 3
      %p258 = pnand %p256, %p257
      %p259 = pneg %p258
      // Predicated region
      $region37: #{tpu_custom_call.1} parent=5 // pred_check
        _
      $region38: #{tpu_custom_call.1} parent=5 // pred_check_branch
        %261 = sbr.rel (%p258) target = $region40
      $region39: #{tpu_custom_call.1} parent=5 // pred_region
        %s262 = ssub.s32 %s19, 1
        %s263 = sand.u32 %s46, 1
        %s264 = scalar_lea.sflag [#allocation5], %s263
        %s265 = sand.u32 %s46, 1
        %s266 = smul.addr %s265, 64
        %s267 = scalar_lea.vmem [#allocation4], %s266
        // Predicated region
        $region41: #{tpu_custom_call.1} parent=39 // pred_check
          %p268 = pneg %p59
        $region42: #{tpu_custom_call.1} parent=39 // pred_check_branch
          %270 = sbr.rel (%p268) target = $region44
        $region43: #{tpu_custom_call.1} parent=39 // pred_region
          %272 = dma.done %s264, 1024
        $region44: #{tpu_custom_call.1} parent=39 // pred_fallthru
          _
        // Predicated region
        $region45: #{tpu_custom_call.1} parent=39 // pred_check
          %p273 = pneg %p80
        $region46: #{tpu_custom_call.1} parent=39 // pred_check_branch
          %275 = sbr.rel (%p273) target = $region48
        $region47: #{tpu_custom_call.1} parent=39 // pred_region
          %277 = dma.done [#allocation8], 3072
        $region48: #{tpu_custom_call.1} parent=39 // pred_fallthru
          _
        // Predicated region
        $region49: #{tpu_custom_call.1} parent=39 // pred_check
          %p278 = pneg %p101
        $region50: #{tpu_custom_call.1} parent=39 // pred_check_branch
          %280 = sbr.rel (%p278) target = $region52
        $region51: #{tpu_custom_call.1} parent=39 // pred_region
          %282 = dma.done [#allocation8], 3072
        $region52: #{tpu_custom_call.1} parent=39 // pred_fallthru
          _
        // Predicated region
        $region53: #{tpu_custom_call.1} parent=39 // pred_check
          %p283 = pneg %p122
        $region54: #{tpu_custom_call.1} parent=39 // pred_check_branch
          %285 = sbr.rel (%p283) target = $region56
        $region55: #{tpu_custom_call.1} parent=39 // pred_region
          %287 = dma.done [#allocation11], 48
        $region56: #{tpu_custom_call.1} parent=39 // pred_fallthru
          _
        %s288 = sand.u32 %s46, 1
        %s289 = scalar_lea.sflag [#allocation5], %s288
        %s290 = sand.u32 %s46, 1
        %s291 = smul.addr %s290, 64
        %s292 = scalar_lea.vmem [#allocation4], %s291
        %p293 = pneg %p59
        %p294 = pneg %p56
        %p295 = pneg %p80
        %p296 = pneg %p77
        %p297 = pneg %p101
        %p298 = pneg %p98
        %p299 = pneg %p122
        %p300 = pneg %p119
        %p301 = pneg %p143
        %p302 = pneg %p140
        %p303 = pneg %p171
        %p304 = pneg %p168
        %s305 = sand.u32 %s158, 1
        %s306 = scalar_lea.sflag [#allocation6], %s305
        %s307 = sand.u32 %s158, 1
        %s308 = smul.addr %s307, 32
        %s309 = scalar_lea.vmem [#allocation12], %s308
        %s310 = smul.u32 8, %s29
        %s311 = smul.u32 8, %s29
        %p312 = scmp.eq.s32.totalorder %s29, 0
        // Predicated region
        $region57: #{tpu_custom_call.1} parent=39 // pred_check
          %p313 = pneg %p312
        $region58: #{tpu_custom_call.1} parent=39 // pred_check_branch
          %315 = sbr.rel (%p313) target = $region60
        $region59: #{tpu_custom_call.1} parent=39 // pred_region
          %316 = vst [vmem:[#allocation2] sm:$0xff] 0.0
        $region60: #{tpu_custom_call.1} parent=39 // pred_fallthru
          _
        %v317 = vld [vmem:[%s267] sm:$0xff]
        %v318 = vld [vmem:[%s267 + $0x8] sm:$0xff]
        %v319 = vld [vmem:[%s267 + $0x10] sm:$0xff]
        %v320 = vld [vmem:[%s267 + $0x18] sm:$0xff]
        %v321 = vld [vmem:[%s267 + $0x20] sm:$0xff]
        %v322 = vld [vmem:[%s267 + $0x28] sm:$0xff]
        %v323 = vld [vmem:[%s267 + $0x30] sm:$0xff]
        %v324 = vld [vmem:[%s267 + $0x38] sm:$0xff]
        %v325 = vpack.c.bf16 %v318, %v317
        %v326 = vpack.c.bf16 %v320, %v319
        %v327 = vpack.c.bf16 %v322, %v321
        %v328 = vpack.c.bf16 %v324, %v323
        %v329 = vld [vmem:[#allocation7] sm:$0xff]
        %v330 = vld [vmem:[#allocation7 + $0x8] sm:$0xf]
        %v331 = vld [vmem:[#allocation7 + $0xc] sm:$0xff]
        %v332 = vld [vmem:[#allocation7 + $0x14] sm:$0xf]
        %v333 = vld [vmem:[#allocation7 + $0x18] sm:$0xff]
        %v334 = vld [vmem:[#allocation7 + $0x20] sm:$0xf]
        %v335 = vld [vmem:[#allocation7 + $0x24] sm:$0xff]
        %v336 = vld [vmem:[#allocation7 + $0x2c] sm:$0xf]
        %v337 = vld [vmem:[#allocation7 + $0x30] sm:$0xff]
        %v338 = vld [vmem:[#allocation7 + $0x38] sm:$0xf]
        %v339 = vld [vmem:[#allocation7 + $0x3c] sm:$0xff]
        %v340 = vld [vmem:[#allocation7 + $0x44] sm:$0xf]
        %v341 = vld [vmem:[#allocation7 + $0x48] sm:$0xff]
        %v342 = vld [vmem:[#allocation7 + $0x50] sm:$0xf]
        %v343 = vld [vmem:[#allocation7 + $0x54] sm:$0xff]
        %v344 = vld [vmem:[#allocation7 + $0x5c] sm:$0xf]
        %v345 = vld [vmem:[#allocation7 + $0x60] sm:$0xff]
        %v346 = vld [vmem:[#allocation7 + $0x68] sm:$0xf]
        %v347 = vld [vmem:[#allocation7 + $0x6c] sm:$0xff]
        %v348 = vld [vmem:[#allocation7 + $0x74] sm:$0xf]
        %v349 = vld [vmem:[#allocation7 + $0x78] sm:$0xff]
        %v350 = vld [vmem:[#allocation7 + $0x80] sm:$0xf]
        %v351 = vld [vmem:[#allocation7 + $0x84] sm:$0xff]
        %v352 = vld [vmem:[#allocation7 + $0x8c] sm:$0xf]
        %v353 = vld [vmem:[#allocation7 + $0x90] sm:$0xff]
        %v354 = vld [vmem:[#allocation7 + $0x98] sm:$0xf]
        %v355 = vld [vmem:[#allocation7 + $0x9c] sm:$0xff]
        %v356 = vld [vmem:[#allocation7 + $0xa4] sm:$0xf]
        %v357 = vld [vmem:[#allocation7 + $0xa8] sm:$0xff]
        %v358 = vld [vmem:[#allocation7 + $0xb0] sm:$0xf]
        %v359 = vld [vmem:[#allocation7 + $0xb4] sm:$0xff]
        %v360 = vld [vmem:[#allocation7 + $0xbc] sm:$0xf]
        %v361 = vld [vmem:[#allocation10] sm:$0x7]
        %v363 = vperm.slane %v361, 0
        %v364 = vperm.slane %v361, 1
        %v365 = vperm.slane %v361, 2
        %v401 = vunpack.c.l.b16 %v329
        %v402 = vunpack.c.h.b16 %v329
        %v403 = vunpack.c.l.b16 %v330
        %v404 = vunpack.c.l.b16 %v331
        %v405 = vunpack.c.h.b16 %v331
        %v406 = vunpack.c.l.b16 %v332
        %v407 = vunpack.c.l.b16 %v333
        %v408 = vunpack.c.h.b16 %v333
        %v409 = vunpack.c.l.b16 %v334
        %v410 = vunpack.c.l.b16 %v335
        %v411 = vunpack.c.h.b16 %v335
        %v412 = vunpack.c.l.b16 %v336
        %v413 = vunpack.c.l.b16 %v337
        %v414 = vunpack.c.h.b16 %v337
        %v415 = vunpack.c.l.b16 %v338
        %v416 = vunpack.c.l.b16 %v339
        %v417 = vunpack.c.h.b16 %v339
        %v418 = vunpack.c.l.b16 %v340
        %v419 = vunpack.c.l.b16 %v341
        %v420 = vunpack.c.h.b16 %v341
        %v421 = vunpack.c.l.b16 %v342
        %v422 = vunpack.c.l.b16 %v343
        %v423 = vunpack.c.h.b16 %v343
        %v424 = vunpack.c.l.b16 %v344
        %v425 = vunpack.c.l.b16 %v345
        %v426 = vunpack.c.h.b16 %v345
        %v427 = vunpack.c.l.b16 %v346
        %v428 = vunpack.c.l.b16 %v347
        %v429 = vunpack.c.h.b16 %v347
        %v430 = vunpack.c.l.b16 %v348
        %v431 = vunpack.c.l.b16 %v349
        %v432 = vunpack.c.h.b16 %v349
        %v433 = vunpack.c.l.b16 %v350
        %v434 = vunpack.c.l.b16 %v351
        %v435 = vunpack.c.h.b16 %v351
        %v436 = vunpack.c.l.b16 %v352
        %v437 = vunpack.c.l.b16 %v353
        %v438 = vunpack.c.h.b16 %v353
        %v439 = vunpack.c.l.b16 %v354
        %v440 = vunpack.c.l.b16 %v355
        %v441 = vunpack.c.h.b16 %v355
        %v442 = vunpack.c.l.b16 %v356
        %v443 = vunpack.c.l.b16 %v357
        %v444 = vunpack.c.h.b16 %v357
        %v445 = vunpack.c.l.b16 %v358
        %v446 = vunpack.c.l.b16 %v359
        %v447 = vunpack.c.h.b16 %v359
        %v448 = vunpack.c.l.b16 %v360
        %v449 = vpack.c.b16 %v404, %v401
        %v450 = vpack.c.b16 %v405, %v402
        %v451 = vpack.c.b16 %v406, %v403
        %v452 = vpack.c.b16 %v410, %v407
        %v453 = vpack.c.b16 %v411, %v408
        %v454 = vpack.c.b16 %v412, %v409
        %v455 = vpack.c.b16 %v416, %v413
        %v456 = vpack.c.b16 %v417, %v414
        %v457 = vpack.c.b16 %v418, %v415
        %v458 = vpack.c.b16 %v422, %v419
        %v459 = vpack.c.b16 %v423, %v420
        %v460 = vpack.c.b16 %v424, %v421
        %v461 = vpack.c.b16 %v428, %v425
        %v462 = vpack.c.b16 %v429, %v426
        %v463 = vpack.c.b16 %v430, %v427
        %v464 = vpack.c.b16 %v434, %v431
        %v465 = vpack.c.b16 %v435, %v432
        %v466 = vpack.c.b16 %v436, %v433
        %v467 = vpack.c.b16 %v440, %v437
        %v468 = vpack.c.b16 %v441, %v438
        %v469 = vpack.c.b16 %v442, %v439
        %v470 = vpack.c.b16 %v446, %v443
        %v471 = vpack.c.b16 %v447, %v444
        %v472 = vpack.c.b16 %v448, %v445
        %497 = vmatpush.bf16.msra.mxu0 %v470
        %498 = vmatpush.bf16.msra.mxu0 %v467
        %499 = vmatpush.bf16.msra.mxu0 %v464
        %500 = vmatpush.bf16.msra.mxu0 %v461
        %501 = vmatpush.bf16.msra.mxu0 %v458
        %502 = vmatpush.bf16.msra.mxu0 %v455
        %503 = vmatpush.bf16.msra.mxu0 %v452
        %504 = vmatpush.bf16.msra.mxu0 %v449
        %505 = vmatmul.bf16.gmra.mxu0 %v325
        %v506 = vpop.f32.mrf.mxu0
        %v507 = vadd.f32 %v363, %v506
        %v508 = vpop.f32.mrf.mxu0
        %v509 = vadd.f32 %v363, %v508
        %510 = vmatmul.bf16.gmra.mxu0 %v326
        %v511 = vpop.f32.mrf.mxu0
        %v512 = vadd.f32 %v363, %v511
        %v513 = vpop.f32.mrf.mxu0
        %v514 = vadd.f32 %v363, %v513
        %515 = vmatmul.bf16.gmra.mxu0 %v327
        %v516 = vpop.f32.mrf.mxu0
        %v517 = vadd.f32 %v363, %v516
        %v518 = vpop.f32.mrf.mxu0
        %v519 = vadd.f32 %v363, %v518
        %520 = vmatmul.bf16.gmra.mxu0 %v328
        %v521 = vpop.f32.mrf.mxu0
        %v522 = vadd.f32 %v363, %v521
        %v523 = vpop.f32.mrf.mxu0
        %v524 = vadd.f32 %v363, %v523
        %525 = vdwg.mxu0
        %526 = vmatpush.bf16.msra.mxu0 %v471
        %527 = vmatpush.bf16.msra.mxu0 %v468
        %528 = vmatpush.bf16.msra.mxu0 %v465
        %529 = vmatpush.bf16.msra.mxu0 %v462
        %530 = vmatpush.bf16.msra.mxu0 %v459
        %531 = vmatpush.bf16.msra.mxu0 %v456
        %532 = vmatpush.bf16.msra.mxu0 %v453
        %533 = vmatpush.bf16.msra.mxu0 %v450
        %534 = vmatmul.bf16.gmra.mxu0 %v325
        %v535 = vpop.f32.mrf.mxu0
        %v536 = vadd.f32 %v364, %v535
        %v537 = vpop.f32.mrf.mxu0
        %v538 = vadd.f32 %v364, %v537
        %539 = vmatmul.bf16.gmra.mxu0 %v326
        %v540 = vpop.f32.mrf.mxu0
        %v541 = vadd.f32 %v364, %v540
        %v542 = vpop.f32.mrf.mxu0
        %v543 = vadd.f32 %v364, %v542
        %544 = vmatmul.bf16.gmra.mxu0 %v327
        %v545 = vpop.f32.mrf.mxu0
        %v546 = vadd.f32 %v364, %v545
        %v547 = vpop.f32.mrf.mxu0
        %v548 = vadd.f32 %v364, %v547
        %549 = vmatmul.bf16.gmra.mxu0 %v328
        %v550 = vpop.f32.mrf.mxu0
        %v551 = vadd.f32 %v364, %v550
        %v552 = vpop.f32.mrf.mxu0
        %v553 = vadd.f32 %v364, %v552
        %554 = vdwg.mxu0
        %555 = vmatpush.bf16.msra.mxu0 %v472
        %556 = vmatpush.bf16.msra.mxu0 %v469
        %557 = vmatpush.bf16.msra.mxu0 %v466
        %558 = vmatpush.bf16.msra.mxu0 %v463
        %559 = vmatpush.bf16.msra.mxu0 %v460
        %560 = vmatpush.bf16.msra.mxu0 %v457
        %561 = vmatpush.bf16.msra.mxu0 %v454
        %562 = vmatpush.bf16.msra.mxu0 %v451
        %563 = vmatmul.bf16.gmra.mxu0 %v325
        %v564 = vpop.f32.mrf.mxu0
        %v565 = vadd.f32 %v365, %v564
        %v566 = vpop.f32.mrf.mxu0
        %v567 = vadd.f32 %v365, %v566
        %568 = vmatmul.bf16.gmra.mxu0 %v326
        %v569 = vpop.f32.mrf.mxu0
        %v570 = vadd.f32 %v365, %v569
        %v571 = vpop.f32.mrf.mxu0
        %v572 = vadd.f32 %v365, %v571
        %573 = vmatmul.bf16.gmra.mxu0 %v327
        %v574 = vpop.f32.mrf.mxu0
        %v575 = vadd.f32 %v365, %v574
        %v576 = vpop.f32.mrf.mxu0
        %v577 = vadd.f32 %v365, %v576
        %578 = vmatmul.bf16.gmra.mxu0 %v328
        %v579 = vpop.f32.mrf.mxu0
        %v580 = vadd.f32 %v365, %v579
        %v581 = vpop.f32.mrf.mxu0
        %v582 = vadd.f32 %v365, %v581
        %583 = vdwg.mxu0
        %584 = vst [vmem:[#allocation3] sm:$0xff] %v507
        %585 = vst [vmem:[#allocation3 + $0x8] sm:$0xff] %v536
        %586 = vst [vmem:[#allocation3 + $0x10] sm:$0xff] %v565
        %587 = vst [vmem:[#allocation3 + $0x18] sm:$0xff] %v509
        %588 = vst [vmem:[#allocation3 + $0x20] sm:$0xff] %v538
        %589 = vst [vmem:[#allocation3 + $0x28] sm:$0xff] %v567
        %590 = vst [vmem:[#allocation3 + $0x30] sm:$0xff] %v512
        %591 = vst [vmem:[#allocation3 + $0x38] sm:$0xff] %v541
        %592 = vst [vmem:[#allocation3 + $0x40] sm:$0xff] %v570
        %593 = vst [vmem:[#allocation3 + $0x48] sm:$0xff] %v514
        %594 = vst [vmem:[#allocation3 + $0x50] sm:$0xff] %v543
        %595 = vst [vmem:[#allocation3 + $0x58] sm:$0xff] %v572
        %596 = vst [vmem:[#allocation3 + $0x60] sm:$0xff] %v517
        %597 = vst [vmem:[#allocation3 + $0x68] sm:$0xff] %v546
        %598 = vst [vmem:[#allocation3 + $0x70] sm:$0xff] %v575
        %599 = vst [vmem:[#allocation3 + $0x78] sm:$0xff] %v519
        %600 = vst [vmem:[#allocation3 + $0x80] sm:$0xff] %v548
        %601 = vst [vmem:[#allocation3 + $0x88] sm:$0xff] %v577
        %602 = vst [vmem:[#allocation3 + $0x90] sm:$0xff] %v522
        %603 = vst [vmem:[#allocation3 + $0x98] sm:$0xff] %v551
        %604 = vst [vmem:[#allocation3 + $0xa0] sm:$0xff] %v580
        %605 = vst [vmem:[#allocation3 + $0xa8] sm:$0xff] %v524
        %606 = vst [vmem:[#allocation3 + $0xb0] sm:$0xff] %v553
        %607 = vst [vmem:[#allocation3 + $0xb8] sm:$0xff] %v582
        %v608 = vld [vmem:[#allocation9] sm:$0xff]
        %v609 = vld [vmem:[#allocation9 + $0x8] sm:$0xf]
        %v610 = vld [vmem:[#allocation9 + $0xc] sm:$0xff]
        %v611 = vld [vmem:[#allocation9 + $0x14] sm:$0xf]
        %v612 = vld [vmem:[#allocation9 + $0x18] sm:$0xff]
        %v613 = vld [vmem:[#allocation9 + $0x20] sm:$0xf]
        %v614 = vld [vmem:[#allocation9 + $0x24] sm:$0xff]
        %v615 = vld [vmem:[#allocation9 + $0x2c] sm:$0xf]
        %v616 = vld [vmem:[#allocation9 + $0x30] sm:$0xff]
        %v617 = vld [vmem:[#allocation9 + $0x38] sm:$0xf]
        %v618 = vld [vmem:[#allocation9 + $0x3c] sm:$0xff]
        %v619 = vld [vmem:[#allocation9 + $0x44] sm:$0xf]
        %v620 = vld [vmem:[#allocation9 + $0x48] sm:$0xff]
        %v621 = vld [vmem:[#allocation9 + $0x50] sm:$0xf]
        %v622 = vld [vmem:[#allocation9 + $0x54] sm:$0xff]
        %v623 = vld [vmem:[#allocation9 + $0x5c] sm:$0xf]
        %v624 = vld [vmem:[#allocation9 + $0x60] sm:$0xff]
        %v625 = vld [vmem:[#allocation9 + $0x68] sm:$0xf]
        %v626 = vld [vmem:[#allocation9 + $0x6c] sm:$0xff]
        %v627 = vld [vmem:[#allocation9 + $0x74] sm:$0xf]
        %v628 = vld [vmem:[#allocation9 + $0x78] sm:$0xff]
        %v629 = vld [vmem:[#allocation9 + $0x80] sm:$0xf]
        %v630 = vld [vmem:[#allocation9 + $0x84] sm:$0xff]
        %v631 = vld [vmem:[#allocation9 + $0x8c] sm:$0xf]
        %v632 = vld [vmem:[#allocation9 + $0x90] sm:$0xff]
        %v633 = vld [vmem:[#allocation9 + $0x98] sm:$0xf]
        %v634 = vld [vmem:[#allocation9 + $0x9c] sm:$0xff]
        %v635 = vld [vmem:[#allocation9 + $0xa4] sm:$0xf]
        %v636 = vld [vmem:[#allocation9 + $0xa8] sm:$0xff]
        %v637 = vld [vmem:[#allocation9 + $0xb0] sm:$0xf]
        %v638 = vld [vmem:[#allocation9 + $0xb4] sm:$0xff]
        %v639 = vld [vmem:[#allocation9 + $0xbc] sm:$0xf]
        %v640 = vld [vmem:[%s4] sm:$0x1]
        %v642 = vperm.slane %v640, 0
        %v644 = vld [vmem:[#allocation2] sm:$0xff]
        %s645 = smul.u32 0, 3
        %s646 = smul.addr %s645, 8
        %s647 = scalar_lea.vmem [#allocation3], %s646
        %v648 = vld [vmem:[%s647] sm:$0xff]
        %v649 = vld [vmem:[%s647 + $0x8] sm:$0xff]
        %v650 = vld [vmem:[%s647 + $0x10] sm:$0xff]
        %v651 = vpack.c.bf16 %v644, %v644
        %v684 = vunpack.c.l.b16 %v608
        %v685 = vunpack.c.h.b16 %v608
        %v686 = vunpack.c.l.b16 %v609
        %v687 = vunpack.c.l.b16 %v610
        %v688 = vunpack.c.h.b16 %v610
        %v689 = vunpack.c.l.b16 %v611
        %v690 = vunpack.c.l.b16 %v612
        %v691 = vunpack.c.h.b16 %v612
        %v692 = vunpack.c.l.b16 %v613
        %v693 = vunpack.c.l.b16 %v614
        %v694 = vunpack.c.h.b16 %v614
        %v695 = vunpack.c.l.b16 %v615
        %v696 = vunpack.c.l.b16 %v616
        %v697 = vunpack.c.h.b16 %v616
        %v698 = vunpack.c.l.b16 %v617
        %v699 = vunpack.c.l.b16 %v618
        %v700 = vunpack.c.h.b16 %v618
        %v701 = vunpack.c.l.b16 %v619
        %v702 = vunpack.c.l.b16 %v620
        %v703 = vunpack.c.h.b16 %v620
        %v704 = vunpack.c.l.b16 %v621
        %v705 = vunpack.c.l.b16 %v622
        %v706 = vunpack.c.h.b16 %v622
        %v707 = vunpack.c.l.b16 %v623
        %v708 = vunpack.c.l.b16 %v624
        %v709 = vunpack.c.h.b16 %v624
        %v710 = vunpack.c.l.b16 %v625
        %v711 = vunpack.c.l.b16 %v626
        %v712 = vunpack.c.h.b16 %v626
        %v713 = vunpack.c.l.b16 %v627
        %v714 = vunpack.c.l.b16 %v628
        %v715 = vunpack.c.h.b16 %v628
        %v716 = vunpack.c.l.b16 %v629
        %v717 = vunpack.c.l.b16 %v630
        %v718 = vunpack.c.h.b16 %v630
        %v719 = vunpack.c.l.b16 %v631
        %v720 = vunpack.c.l.b16 %v632
        %v721 = vunpack.c.h.b16 %v632
        %v722 = vunpack.c.l.b16 %v633
        %v723 = vunpack.c.l.b16 %v634
        %v724 = vunpack.c.h.b16 %v634
        %v725 = vunpack.c.l.b16 %v635
        %v726 = vunpack.c.l.b16 %v636
        %v727 = vunpack.c.h.b16 %v636
        %v728 = vunpack.c.l.b16 %v637
        %v729 = vunpack.c.l.b16 %v638
        %v730 = vunpack.c.h.b16 %v638
        %v731 = vunpack.c.l.b16 %v639
        %v732 = vpack.c.b16 %v687, %v684
        %v733 = vpack.c.b16 %v688, %v685
        %v734 = vpack.c.b16 %v689, %v686
        %v735 = vpack.c.b16 %v693, %v690
        %v736 = vpack.c.b16 %v694, %v691
        %v737 = vpack.c.b16 %v695, %v692
        %v738 = vpack.c.b16 %v699, %v696
        %v739 = vpack.c.b16 %v700, %v697
        %v740 = vpack.c.b16 %v701, %v698
        %v741 = vpack.c.b16 %v705, %v702
        %v742 = vpack.c.b16 %v706, %v703
        %v743 = vpack.c.b16 %v707, %v704
        %v744 = vpack.c.b16 %v711, %v708
        %v745 = vpack.c.b16 %v712, %v709
        %v746 = vpack.c.b16 %v713, %v710
        %v747 = vpack.c.b16 %v717, %v714
        %v748 = vpack.c.b16 %v718, %v715
        %v749 = vpack.c.b16 %v719, %v716
        %v750 = vpack.c.b16 %v723, %v720
        %v751 = vpack.c.b16 %v724, %v721
        %v752 = vpack.c.b16 %v725, %v722
        %v753 = vpack.c.b16 %v729, %v726
        %v754 = vpack.c.b16 %v730, %v727
        %v755 = vpack.c.b16 %v731, %v728
        %780 = vmatpush.bf16.msra.mxu0 %v753
        %781 = vmatpush.bf16.msra.mxu0 %v750
        %782 = vmatpush.bf16.msra.mxu0 %v747
        %783 = vmatpush.bf16.msra.mxu0 %v744
        %784 = vmatpush.bf16.msra.mxu0 %v741
        %785 = vmatpush.bf16.msra.mxu0 %v738
        %786 = vmatpush.bf16.msra.mxu0 %v735
        %787 = vmatpush.bf16.msra.mxu0 %v732
        %788 = vmatmul.bf16.gmra.mxu0 %v651
        %v789 = vpop.f32.mrf.mxu0
        %v790 = vadd.f32 0.0, %v789
        %v791 = vpop.f32.mrf.mxu0
        %792 = vdwg.mxu0
        %793 = vmatpush.bf16.msra.mxu0 %v754
        %794 = vmatpush.bf16.msra.mxu0 %v751
        %795 = vmatpush.bf16.msra.mxu0 %v748
        %796 = vmatpush.bf16.msra.mxu0 %v745
        %797 = vmatpush.bf16.msra.mxu0 %v742
        %798 = vmatpush.bf16.msra.mxu0 %v739
        %799 = vmatpush.bf16.msra.mxu0 %v736
        %800 = vmatpush.bf16.msra.mxu0 %v733
        %801 = vmatmul.bf16.gmra.mxu0 %v651
        %v802 = vpop.f32.mrf.mxu0
        %v803 = vadd.f32 0.0, %v802
        %v804 = vpop.f32.mrf.mxu0
        %805 = vdwg.mxu0
        %806 = vmatpush.bf16.msra.mxu0 %v755
        %807 = vmatpush.bf16.msra.mxu0 %v752
        %808 = vmatpush.bf16.msra.mxu0 %v749
        %809 = vmatpush.bf16.msra.mxu0 %v746
        %810 = vmatpush.bf16.msra.mxu0 %v743
        %811 = vmatpush.bf16.msra.mxu0 %v740
        %812 = vmatpush.bf16.msra.mxu0 %v737
        %813 = vmatpush.bf16.msra.mxu0 %v734
        %814 = vmatmul.bf16.gmra.mxu0 %v651
        %v815 = vpop.f32.mrf.mxu0
        %v816 = vadd.f32 0.0, %v815
        %v817 = vpop.f32.mrf.mxu0
        %818 = vdwg.mxu0
        %v819 = vadd.f32 %v648, %v790
        %v820 = vxor.u32 %v819, 2147483648
        %v821 = vmul.f32 %v820, 1.442695
        %v822 = vpow.pop %v821
        %v823 = vadd.f32 %v822, 1.0
        %v824 = vrcp.pop %v823
        %v825 = vmul.f32 %v823, %v824
        %v826 = vsub.f32 1.0, %v825
        %v827 = vmul.f32 %v824, %v826
        %v828 = vadd.f32 %v824, %v827
        %vm829 = vweird.f32 %v823
        %vm830 = vweird.f32 %v824
        %vm831 = vmor %vm829, %vm830
        %v832 = vsel %vm831, %v824, %v828
        %v833 = vand.u32 2147483647, %v823
        %vm834 = vcmp.eq.f32.partialorder %v833, 8.507059e+37
        %v835 = vand.u32 %v823, 2147483648
        %v836 = vor.u32 1.1754944e-38, %v835
        %v837 = vsel %vm834, %v836, %v832
        %v838 = vmul.f32 1.0, %v837
        %v839 = vadd.f32 %v649, %v803
        %v840 = vxor.u32 %v839, 2147483648
        %v841 = vmul.f32 %v840, 1.442695
        %v842 = vpow.pop %v841
        %v843 = vadd.f32 %v842, 1.0
        %v844 = vrcp.pop %v843
        %v845 = vmul.f32 %v843, %v844
        %v846 = vsub.f32 1.0, %v845
        %v847 = vmul.f32 %v844, %v846
        %v848 = vadd.f32 %v844, %v847
        %vm849 = vweird.f32 %v843
        %vm850 = vweird.f32 %v844
        %vm851 = vmor %vm849, %vm850
        %v852 = vsel %vm851, %v844, %v848
        %v853 = vand.u32 2147483647, %v843
        %vm854 = vcmp.eq.f32.partialorder %v853, 8.507059e+37
        %v855 = vand.u32 %v843, 2147483648
        %v856 = vor.u32 1.1754944e-38, %v855
        %v857 = vsel %vm854, %v856, %v852
        %v858 = vmul.f32 1.0, %v857
        %v859 = vadd.f32 %v816, %v642
        %v860 = vmul.f32 %v838, %v859
        %v861 = vadd.f32 %v650, %v860
        %v862 = vtanh.pop %v861
        %v863 = vsub.f32 %v644, %v862
        %v864 = vmul.f32 %v858, %v863
        %v865 = vadd.f32 %v862, %v864
        %v866 = vpack.c.bf16 %v865, %v865
        %867 = vst [vmem:[%s309] sm:$0xf] %v866
        %s868 = smul.u32 1, 3
        %s869 = smul.addr %s868, 8
        %s870 = scalar_lea.vmem [#allocation3], %s869
        %v871 = vld [vmem:[%s870] sm:$0xff]
        %v872 = vld [vmem:[%s870 + $0x8] sm:$0xff]
        %v873 = vld [vmem:[%s870 + $0x10] sm:$0xff]
        %874 = vmatpush.bf16.msra.mxu0 %v753
        %875 = vmatpush.bf16.msra.mxu0 %v750
        %876 = vmatpush.bf16.msra.mxu0 %v747
        %877 = vmatpush.bf16.msra.mxu0 %v744
        %878 = vmatpush.bf16.msra.mxu0 %v741
        %879 = vmatpush.bf16.msra.mxu0 %v738
        %880 = vmatpush.bf16.msra.mxu0 %v735
        %881 = vmatpush.bf16.msra.mxu0 %v732
        %882 = vmatmul.bf16.gmra.mxu0 %v866
        %v883 = vpop.f32.mrf.mxu0
        %v884 = vadd.f32 0.0, %v883
        %v885 = vpop.f32.mrf.mxu0
        %886 = vdwg.mxu0
        %887 = vmatpush.bf16.msra.mxu0 %v754
        %888 = vmatpush.bf16.msra.mxu0 %v751
        %889 = vmatpush.bf16.msra.mxu0 %v748
        %890 = vmatpush.bf16.msra.mxu0 %v745
        %891 = vmatpush.bf16.msra.mxu0 %v742
        %892 = vmatpush.bf16.msra.mxu0 %v739
        %893 = vmatpush.bf16.msra.mxu0 %v736
        %894 = vmatpush.bf16.msra.mxu0 %v733
        %895 = vmatmul.bf16.gmra.mxu0 %v866
        %v896 = vpop.f32.mrf.mxu0
        %v897 = vadd.f32 0.0, %v896
        %v898 = vpop.f32.mrf.mxu0
        %899 = vdwg.mxu0
        %900 = vmatpush.bf16.msra.mxu0 %v755
        %901 = vmatpush.bf16.msra.mxu0 %v752
        %902 = vmatpush.bf16.msra.mxu0 %v749
        %903 = vmatpush.bf16.msra.mxu0 %v746
        %904 = vmatpush.bf16.msra.mxu0 %v743
        %905 = vmatpush.bf16.msra.mxu0 %v740
        %906 = vmatpush.bf16.msra.mxu0 %v737
        %907 = vmatpush.bf16.msra.mxu0 %v734
        %908 = vmatmul.bf16.gmra.mxu0 %v866
        %v909 = vpop.f32.mrf.mxu0
        %v910 = vadd.f32 0.0, %v909
        %v911 = vpop.f32.mrf.mxu0
        %912 = vdwg.mxu0
        %v913 = vadd.f32 %v871, %v884
        %v914 = vxor.u32 %v913, 2147483648
        %v915 = vmul.f32 %v914, 1.442695
        %v916 = vpow.pop %v915
        %v917 = vadd.f32 %v916, 1.0
        %v918 = vrcp.pop %v917
        %v919 = vmul.f32 %v917, %v918
        %v920 = vsub.f32 1.0, %v919
        %v921 = vmul.f32 %v918, %v920
        %v922 = vadd.f32 %v918, %v921
        %vm923 = vweird.f32 %v917
        %vm924 = vweird.f32 %v918
        %vm925 = vmor %vm923, %vm924
        %v926 = vsel %vm925, %v918, %v922
        %v927 = vand.u32 2147483647, %v917
        %vm928 = vcmp.eq.f32.partialorder %v927, 8.507059e+37
        %v929 = vand.u32 %v917, 2147483648
        %v930 = vor.u32 1.1754944e-38, %v929
        %v931 = vsel %vm928, %v930, %v926
        %v932 = vmul.f32 1.0, %v931
        %v933 = vadd.f32 %v872, %v897
        %v934 = vxor.u32 %v933, 2147483648
        %v935 = vmul.f32 %v934, 1.442695
        %v936 = vpow.pop %v935
        %v937 = vadd.f32 %v936, 1.0
        %v938 = vrcp.pop %v937
        %v939 = vmul.f32 %v937, %v938
        %v940 = vsub.f32 1.0, %v939
        %v941 = vmul.f32 %v938, %v940
        %v942 = vadd.f32 %v938, %v941
        %vm943 = vweird.f32 %v937
        %vm944 = vweird.f32 %v938
        %vm945 = vmor %vm943, %vm944
        %v946 = vsel %vm945, %v938, %v942
        %v947 = vand.u32 2147483647, %v937
        %vm948 = vcmp.eq.f32.partialorder %v947, 8.507059e+37
        %v949 = vand.u32 %v937, 2147483648
        %v950 = vor.u32 1.1754944e-38, %v949
        %v951 = vsel %vm948, %v950, %v946
        %v952 = vmul.f32 1.0, %v951
        %v953 = vadd.f32 %v910, %v642
        %v954 = vmul.f32 %v932, %v953
        %v955 = vadd.f32 %v873, %v954
        %v956 = vtanh.pop %v955
        %v957 = vsub.f32 %v865, %v956
        %v958 = vmul.f32 %v952, %v957
        %v959 = vadd.f32 %v956, %v958
        %v960 = vpack.c.bf16 %v959, %v959
        %s961 = scalar_lea.vmem %s309, 4 [#allocation12]
        %962 = vst [vmem:[%s961] sm:$0xf] %v960
        %s963 = smul.u32 2, 3
        %s964 = smul.addr %s963, 8
        %s965 = scalar_lea.vmem [#allocation3], %s964
        %v966 = vld [vmem:[%s965] sm:$0xff]
        %v967 = vld [vmem:[%s965 + $0x8] sm:$0xff]
        %v968 = vld [vmem:[%s965 + $0x10] sm:$0xff]
        %969 = vmatpush.bf16.msra.mxu0 %v753
        %970 = vmatpush.bf16.msra.mxu0 %v750
        %971 = vmatpush.bf16.msra.mxu0 %v747
        %972 = vmatpush.bf16.msra.mxu0 %v744
        %973 = vmatpush.bf16.msra.mxu0 %v741
        %974 = vmatpush.bf16.msra.mxu0 %v738
        %975 = vmatpush.bf16.msra.mxu0 %v735
        %976 = vmatpush.bf16.msra.mxu0 %v732
        %977 = vmatmul.bf16.gmra.mxu0 %v960
        %v978 = vpop.f32.mrf.mxu0
        %v979 = vadd.f32 0.0, %v978
        %v980 = vpop.f32.mrf.mxu0
        %981 = vdwg.mxu0
        %982 = vmatpush.bf16.msra.mxu0 %v754
        %983 = vmatpush.bf16.msra.mxu0 %v751
        %984 = vmatpush.bf16.msra.mxu0 %v748
        %985 = vmatpush.bf16.msra.mxu0 %v745
        %986 = vmatpush.bf16.msra.mxu0 %v742
        %987 = vmatpush.bf16.msra.mxu0 %v739
        %988 = vmatpush.bf16.msra.mxu0 %v736
        %989 = vmatpush.bf16.msra.mxu0 %v733
        %990 = vmatmul.bf16.gmra.mxu0 %v960
        %v991 = vpop.f32.mrf.mxu0
        %v992 = vadd.f32 0.0, %v991
        %v993 = vpop.f32.mrf.mxu0
        %994 = vdwg.mxu0
        %995 = vmatpush.bf16.msra.mxu0 %v755
        %996 = vmatpush.bf16.msra.mxu0 %v752
        %997 = vmatpush.bf16.msra.mxu0 %v749
        %998 = vmatpush.bf16.msra.mxu0 %v746
        %999 = vmatpush.bf16.msra.mxu0 %v743
        %1000 = vmatpush.bf16.msra.mxu0 %v740
        %1001 = vmatpush.bf16.msra.mxu0 %v737
        %1002 = vmatpush.bf16.msra.mxu0 %v734
        %1003 = vmatmul.bf16.gmra.mxu0 %v960
        %v1004 = vpop.f32.mrf.mxu0
        %v1005 = vadd.f32 0.0, %v1004
        %v1006 = vpop.f32.mrf.mxu0
        %1007 = vdwg.mxu0
        %v1008 = vadd.f32 %v966, %v979
        %v1009 = vxor.u32 %v1008, 2147483648
        %v1010 = vmul.f32 %v1009, 1.442695
        %v1011 = vpow.pop %v1010
        %v1012 = vadd.f32 %v1011, 1.0
        %v1013 = vrcp.pop %v1012
        %v1014 = vmul.f32 %v1012, %v1013
        %v1015 = vsub.f32 1.0, %v1014
        %v1016 = vmul.f32 %v1013, %v1015
        %v1017 = vadd.f32 %v1013, %v1016
        %vm1018 = vweird.f32 %v1012
        %vm1019 = vweird.f32 %v1013
        %vm1020 = vmor %vm1018, %vm1019
        %v1021 = vsel %vm1020, %v1013, %v1017
        %v1022 = vand.u32 2147483647, %v1012
        %vm1023 = vcmp.eq.f32.partialorder %v1022, 8.507059e+37
        %v1024 = vand.u32 %v1012, 2147483648
        %v1025 = vor.u32 1.1754944e-38, %v1024
        %v1026 = vsel %vm1023, %v1025, %v1021
        %v1027 = vmul.f32 1.0, %v1026
        %v1028 = vadd.f32 %v967, %v992
        %v1029 = vxor.u32 %v1028, 2147483648
        %v1030 = vmul.f32 %v1029, 1.442695
        %v1031 = vpow.pop %v1030
        %v1032 = vadd.f32 %v1031, 1.0
        %v1033 = vrcp.pop %v1032
        %v1034 = vmul.f32 %v1032, %v1033
        %v1035 = vsub.f32 1.0, %v1034
        %v1036 = vmul.f32 %v1033, %v1035
        %v1037 = vadd.f32 %v1033, %v1036
        %vm1038 = vweird.f32 %v1032
        %vm1039 = vweird.f32 %v1033
        %vm1040 = vmor %vm1038, %vm1039
        %v1041 = vsel %vm1040, %v1033, %v1037
        %v1042 = vand.u32 2147483647, %v1032
        %vm1043 = vcmp.eq.f32.partialorder %v1042, 8.507059e+37
        %v1044 = vand.u32 %v1032, 2147483648
        %v1045 = vor.u32 1.1754944e-38, %v1044
        %v1046 = vsel %vm1043, %v1045, %v1041
        %v1047 = vmul.f32 1.0, %v1046
        %v1048 = vadd.f32 %v1005, %v642
        %v1049 = vmul.f32 %v1027, %v1048
        %v1050 = vadd.f32 %v968, %v1049
        %v1051 = vtanh.pop %v1050
        %v1052 = vsub.f32 %v959, %v1051
        %v1053 = vmul.f32 %v1047, %v1052
        %v1054 = vadd.f32 %v1051, %v1053
        %v1055 = vpack.c.bf16 %v1054, %v1054
        %s1056 = scalar_lea.vmem %s309, 8 [#allocation12]
        %1057 = vst [vmem:[%s1056] sm:$0xf] %v1055
        %s1058 = smul.u32 3, 3
        %s1059 = smul.addr %s1058, 8
        %s1060 = scalar_lea.vmem [#allocation3], %s1059
        %v1061 = vld [vmem:[%s1060] sm:$0xff]
        %v1062 = vld [vmem:[%s1060 + $0x8] sm:$0xff]
        %v1063 = vld [vmem:[%s1060 + $0x10] sm:$0xff]
        %1064 = vmatpush.bf16.msra.mxu0 %v753
        %1065 = vmatpush.bf16.msra.mxu0 %v750
        %1066 = vmatpush.bf16.msra.mxu0 %v747
        %1067 = vmatpush.bf16.msra.mxu0 %v744
        %1068 = vmatpush.bf16.msra.mxu0 %v741
        %1069 = vmatpush.bf16.msra.mxu0 %v738
        %1070 = vmatpush.bf16.msra.mxu0 %v735
        %1071 = vmatpush.bf16.msra.mxu0 %v732
        %1072 = vmatmul.bf16.gmra.mxu0 %v1055
        %v1073 = vpop.f32.mrf.mxu0
        %v1074 = vadd.f32 0.0, %v1073
        %v1075 = vpop.f32.mrf.mxu0
        %1076 = vdwg.mxu0
        %1077 = vmatpush.bf16.msra.mxu0 %v754
        %1078 = vmatpush.bf16.msra.mxu0 %v751
        %1079 = vmatpush.bf16.msra.mxu0 %v748
        %1080 = vmatpush.bf16.msra.mxu0 %v745
        %1081 = vmatpush.bf16.msra.mxu0 %v742
        %1082 = vmatpush.bf16.msra.mxu0 %v739
        %1083 = vmatpush.bf16.msra.mxu0 %v736
        %1084 = vmatpush.bf16.msra.mxu0 %v733
        %1085 = vmatmul.bf16.gmra.mxu0 %v1055
        %v1086 = vpop.f32.mrf.mxu0
        %v1087 = vadd.f32 0.0, %v1086
        %v1088 = vpop.f32.mrf.mxu0
        %1089 = vdwg.mxu0
        %1090 = vmatpush.bf16.msra.mxu0 %v755
        %1091 = vmatpush.bf16.msra.mxu0 %v752
        %1092 = vmatpush.bf16.msra.mxu0 %v749
        %1093 = vmatpush.bf16.msra.mxu0 %v746
        %1094 = vmatpush.bf16.msra.mxu0 %v743
        %1095 = vmatpush.bf16.msra.mxu0 %v740
        %1096 = vmatpush.bf16.msra.mxu0 %v737
        %1097 = vmatpush.bf16.msra.mxu0 %v734
        %1098 = vmatmul.bf16.gmra.mxu0 %v1055
        %v1099 = vpop.f32.mrf.mxu0
        %v1100 = vadd.f32 0.0, %v1099
        %v1101 = vpop.f32.mrf.mxu0
        %1102 = vdwg.mxu0
        %v1103 = vadd.f32 %v1061, %v1074
        %v1104 = vxor.u32 %v1103, 2147483648
        %v1105 = vmul.f32 %v1104, 1.442695
        %v1106 = vpow.pop %v1105
        %v1107 = vadd.f32 %v1106, 1.0
        %v1108 = vrcp.pop %v1107
        %v1109 = vmul.f32 %v1107, %v1108
        %v1110 = vsub.f32 1.0, %v1109
        %v1111 = vmul.f32 %v1108, %v1110
        %v1112 = vadd.f32 %v1108, %v1111
        %vm1113 = vweird.f32 %v1107
        %vm1114 = vweird.f32 %v1108
        %vm1115 = vmor %vm1113, %vm1114
        %v1116 = vsel %vm1115, %v1108, %v1112
        %v1117 = vand.u32 2147483647, %v1107
        %vm1118 = vcmp.eq.f32.partialorder %v1117, 8.507059e+37
        %v1119 = vand.u32 %v1107, 2147483648
        %v1120 = vor.u32 1.1754944e-38, %v1119
        %v1121 = vsel %vm1118, %v1120, %v1116
        %v1122 = vmul.f32 1.0, %v1121
        %v1123 = vadd.f32 %v1062, %v1087
        %v1124 = vxor.u32 %v1123, 2147483648
        %v1125 = vmul.f32 %v1124, 1.442695
        %v1126 = vpow.pop %v1125
        %v1127 = vadd.f32 %v1126, 1.0
        %v1128 = vrcp.pop %v1127
        %v1129 = vmul.f32 %v1127, %v1128
        %v1130 = vsub.f32 1.0, %v1129
        %v1131 = vmul.f32 %v1128, %v1130
        %v1132 = vadd.f32 %v1128, %v1131
        %vm1133 = vweird.f32 %v1127
        %vm1134 = vweird.f32 %v1128
        %vm1135 = vmor %vm1133, %vm1134
        %v1136 = vsel %vm1135, %v1128, %v1132
        %v1137 = vand.u32 2147483647, %v1127
        %vm1138 = vcmp.eq.f32.partialorder %v1137, 8.507059e+37
        %v1139 = vand.u32 %v1127, 2147483648
        %v1140 = vor.u32 1.1754944e-38, %v1139
        %v1141 = vsel %vm1138, %v1140, %v1136
        %v1142 = vmul.f32 1.0, %v1141
        %v1143 = vadd.f32 %v1100, %v642
        %v1144 = vmul.f32 %v1122, %v1143
        %v1145 = vadd.f32 %v1063, %v1144
        %v1146 = vtanh.pop %v1145
        %v1147 = vsub.f32 %v1054, %v1146
        %v1148 = vmul.f32 %v1142, %v1147
        %v1149 = vadd.f32 %v1146, %v1148
        %v1150 = vpack.c.bf16 %v1149, %v1149
        %s1151 = scalar_lea.vmem %s309, 12 [#allocation12]
        %1152 = vst [vmem:[%s1151] sm:$0xf] %v1150
        %s1153 = smul.u32 4, 3
        %s1154 = smul.addr %s1153, 8
        %s1155 = scalar_lea.vmem [#allocation3], %s1154
        %v1156 = vld [vmem:[%s1155] sm:$0xff]
        %v1157 = vld [vmem:[%s1155 + $0x8] sm:$0xff]
        %v1158 = vld [vmem:[%s1155 + $0x10] sm:$0xff]
        %1159 = vmatpush.bf16.msra.mxu0 %v753
        %1160 = vmatpush.bf16.msra.mxu0 %v750
        %1161 = vmatpush.bf16.msra.mxu0 %v747
        %1162 = vmatpush.bf16.msra.mxu0 %v744
        %1163 = vmatpush.bf16.msra.mxu0 %v741
        %1164 = vmatpush.bf16.msra.mxu0 %v738
        %1165 = vmatpush.bf16.msra.mxu0 %v735
        %1166 = vmatpush.bf16.msra.mxu0 %v732
        %1167 = vmatmul.bf16.gmra.mxu0 %v1150
        %v1168 = vpop.f32.mrf.mxu0
        %v1169 = vadd.f32 0.0, %v1168
        %v1170 = vpop.f32.mrf.mxu0
        %1171 = vdwg.mxu0
        %1172 = vmatpush.bf16.msra.mxu0 %v754
        %1173 = vmatpush.bf16.msra.mxu0 %v751
        %1174 = vmatpush.bf16.msra.mxu0 %v748
        %1175 = vmatpush.bf16.msra.mxu0 %v745
        %1176 = vmatpush.bf16.msra.mxu0 %v742
        %1177 = vmatpush.bf16.msra.mxu0 %v739
        %1178 = vmatpush.bf16.msra.mxu0 %v736
        %1179 = vmatpush.bf16.msra.mxu0 %v733
        %1180 = vmatmul.bf16.gmra.mxu0 %v1150
        %v1181 = vpop.f32.mrf.mxu0
        %v1182 = vadd.f32 0.0, %v1181
        %v1183 = vpop.f32.mrf.mxu0
        %1184 = vdwg.mxu0
        %1185 = vmatpush.bf16.msra.mxu0 %v755
        %1186 = vmatpush.bf16.msra.mxu0 %v752
        %1187 = vmatpush.bf16.msra.mxu0 %v749
        %1188 = vmatpush.bf16.msra.mxu0 %v746
        %1189 = vmatpush.bf16.msra.mxu0 %v743
        %1190 = vmatpush.bf16.msra.mxu0 %v740
        %1191 = vmatpush.bf16.msra.mxu0 %v737
        %1192 = vmatpush.bf16.msra.mxu0 %v734
        %1193 = vmatmul.bf16.gmra.mxu0 %v1150
        %v1194 = vpop.f32.mrf.mxu0
        %v1195 = vadd.f32 0.0, %v1194
        %v1196 = vpop.f32.mrf.mxu0
        %1197 = vdwg.mxu0
        %v1198 = vadd.f32 %v1156, %v1169
        %v1199 = vxor.u32 %v1198, 2147483648
        %v1200 = vmul.f32 %v1199, 1.442695
        %v1201 = vpow.pop %v1200
        %v1202 = vadd.f32 %v1201, 1.0
        %v1203 = vrcp.pop %v1202
        %v1204 = vmul.f32 %v1202, %v1203
        %v1205 = vsub.f32 1.0, %v1204
        %v1206 = vmul.f32 %v1203, %v1205
        %v1207 = vadd.f32 %v1203, %v1206
        %vm1208 = vweird.f32 %v1202
        %vm1209 = vweird.f32 %v1203
        %vm1210 = vmor %vm1208, %vm1209
        %v1211 = vsel %vm1210, %v1203, %v1207
        %v1212 = vand.u32 2147483647, %v1202
        %vm1213 = vcmp.eq.f32.partialorder %v1212, 8.507059e+37
        %v1214 = vand.u32 %v1202, 2147483648
        %v1215 = vor.u32 1.1754944e-38, %v1214
        %v1216 = vsel %vm1213, %v1215, %v1211
        %v1217 = vmul.f32 1.0, %v1216
        %v1218 = vadd.f32 %v1157, %v1182
        %v1219 = vxor.u32 %v1218, 2147483648
        %v1220 = vmul.f32 %v1219, 1.442695
        %v1221 = vpow.pop %v1220
        %v1222 = vadd.f32 %v1221, 1.0
        %v1223 = vrcp.pop %v1222
        %v1224 = vmul.f32 %v1222, %v1223
        %v1225 = vsub.f32 1.0, %v1224
        %v1226 = vmul.f32 %v1223, %v1225
        %v1227 = vadd.f32 %v1223, %v1226
        %vm1228 = vweird.f32 %v1222
        %vm1229 = vweird.f32 %v1223
        %vm1230 = vmor %vm1228, %vm1229
        %v1231 = vsel %vm1230, %v1223, %v1227
        %v1232 = vand.u32 2147483647, %v1222
        %vm1233 = vcmp.eq.f32.partialorder %v1232, 8.507059e+37
        %v1234 = vand.u32 %v1222, 2147483648
        %v1235 = vor.u32 1.1754944e-38, %v1234
        %v1236 = vsel %vm1233, %v1235, %v1231
        %v1237 = vmul.f32 1.0, %v1236
        %v1238 = vadd.f32 %v1195, %v642
        %v1239 = vmul.f32 %v1217, %v1238
        %v1240 = vadd.f32 %v1158, %v1239
        %v1241 = vtanh.pop %v1240
        %v1242 = vsub.f32 %v1149, %v1241
        %v1243 = vmul.f32 %v1237, %v1242
        %v1244 = vadd.f32 %v1241, %v1243
        %v1245 = vpack.c.bf16 %v1244, %v1244
        %s1246 = scalar_lea.vmem %s309, 16 [#allocation12]
        %1247 = vst [vmem:[%s1246] sm:$0xf] %v1245
        %s1248 = smul.u32 5, 3
        %s1249 = smul.addr %s1248, 8
        %s1250 = scalar_lea.vmem [#allocation3], %s1249
        %v1251 = vld [vmem:[%s1250] sm:$0xff]
        %v1252 = vld [vmem:[%s1250 + $0x8] sm:$0xff]
        %v1253 = vld [vmem:[%s1250 + $0x10] sm:$0xff]
        %1254 = vmatpush.bf16.msra.mxu0 %v753
        %1255 = vmatpush.bf16.msra.mxu0 %v750
        %1256 = vmatpush.bf16.msra.mxu0 %v747
        %1257 = vmatpush.bf16.msra.mxu0 %v744
        %1258 = vmatpush.bf16.msra.mxu0 %v741
        %1259 = vmatpush.bf16.msra.mxu0 %v738
        %1260 = vmatpush.bf16.msra.mxu0 %v735
        %1261 = vmatpush.bf16.msra.mxu0 %v732
        %1262 = vmatmul.bf16.gmra.mxu0 %v1245
        %v1263 = vpop.f32.mrf.mxu0
        %v1264 = vadd.f32 0.0, %v1263
        %v1265 = vpop.f32.mrf.mxu0
        %1266 = vdwg.mxu0
        %1267 = vmatpush.bf16.msra.mxu0 %v754
        %1268 = vmatpush.bf16.msra.mxu0 %v751
        %1269 = vmatpush.bf16.msra.mxu0 %v748
        %1270 = vmatpush.bf16.msra.mxu0 %v745
        %1271 = vmatpush.bf16.msra.mxu0 %v742
        %1272 = vmatpush.bf16.msra.mxu0 %v739
        %1273 = vmatpush.bf16.msra.mxu0 %v736
        %1274 = vmatpush.bf16.msra.mxu0 %v733
        %1275 = vmatmul.bf16.gmra.mxu0 %v1245
        %v1276 = vpop.f32.mrf.mxu0
        %v1277 = vadd.f32 0.0, %v1276
        %v1278 = vpop.f32.mrf.mxu0
        %1279 = vdwg.mxu0
        %1280 = vmatpush.bf16.msra.mxu0 %v755
        %1281 = vmatpush.bf16.msra.mxu0 %v752
        %1282 = vmatpush.bf16.msra.mxu0 %v749
        %1283 = vmatpush.bf16.msra.mxu0 %v746
        %1284 = vmatpush.bf16.msra.mxu0 %v743
        %1285 = vmatpush.bf16.msra.mxu0 %v740
        %1286 = vmatpush.bf16.msra.mxu0 %v737
        %1287 = vmatpush.bf16.msra.mxu0 %v734
        %1288 = vmatmul.bf16.gmra.mxu0 %v1245
        %v1289 = vpop.f32.mrf.mxu0
        %v1290 = vadd.f32 0.0, %v1289
        %v1291 = vpop.f32.mrf.mxu0
        %1292 = vdwg.mxu0
        %v1293 = vadd.f32 %v1251, %v1264
        %v1294 = vxor.u32 %v1293, 2147483648
        %v1295 = vmul.f32 %v1294, 1.442695
        %v1296 = vpow.pop %v1295
        %v1297 = vadd.f32 %v1296, 1.0
        %v1298 = vrcp.pop %v1297
        %v1299 = vmul.f32 %v1297, %v1298
        %v1300 = vsub.f32 1.0, %v1299
        %v1301 = vmul.f32 %v1298, %v1300
        %v1302 = vadd.f32 %v1298, %v1301
        %vm1303 = vweird.f32 %v1297
        %vm1304 = vweird.f32 %v1298
        %vm1305 = vmor %vm1303, %vm1304
        %v1306 = vsel %vm1305, %v1298, %v1302
        %v1307 = vand.u32 2147483647, %v1297
        %vm1308 = vcmp.eq.f32.partialorder %v1307, 8.507059e+37
        %v1309 = vand.u32 %v1297, 2147483648
        %v1310 = vor.u32 1.1754944e-38, %v1309
        %v1311 = vsel %vm1308, %v1310, %v1306
        %v1312 = vmul.f32 1.0, %v1311
        %v1313 = vadd.f32 %v1252, %v1277
        %v1314 = vxor.u32 %v1313, 2147483648
        %v1315 = vmul.f32 %v1314, 1.442695
        %v1316 = vpow.pop %v1315
        %v1317 = vadd.f32 %v1316, 1.0
        %v1318 = vrcp.pop %v1317
        %v1319 = vmul.f32 %v1317, %v1318
        %v1320 = vsub.f32 1.0, %v1319
        %v1321 = vmul.f32 %v1318, %v1320
        %v1322 = vadd.f32 %v1318, %v1321
        %vm1323 = vweird.f32 %v1317
        %vm1324 = vweird.f32 %v1318
        %vm1325 = vmor %vm1323, %vm1324
        %v1326 = vsel %vm1325, %v1318, %v1322
        %v1327 = vand.u32 2147483647, %v1317
        %vm1328 = vcmp.eq.f32.partialorder %v1327, 8.507059e+37
        %v1329 = vand.u32 %v1317, 2147483648
        %v1330 = vor.u32 1.1754944e-38, %v1329
        %v1331 = vsel %vm1328, %v1330, %v1326
        %v1332 = vmul.f32 1.0, %v1331
        %v1333 = vadd.f32 %v1290, %v642
        %v1334 = vmul.f32 %v1312, %v1333
        %v1335 = vadd.f32 %v1253, %v1334
        %v1336 = vtanh.pop %v1335
        %v1337 = vsub.f32 %v1244, %v1336
        %v1338 = vmul.f32 %v1332, %v1337
        %v1339 = vadd.f32 %v1336, %v1338
        %v1340 = vpack.c.bf16 %v1339, %v1339
        %s1341 = scalar_lea.vmem %s309, 20 [#allocation12]
        %1342 = vst [vmem:[%s1341] sm:$0xf] %v1340
        %s1343 = smul.u32 6, 3
        %s1344 = smul.addr %s1343, 8
        %s1345 = scalar_lea.vmem [#allocation3], %s1344
        %v1346 = vld [vmem:[%s1345] sm:$0xff]
        %v1347 = vld [vmem:[%s1345 + $0x8] sm:$0xff]
        %v1348 = vld [vmem:[%s1345 + $0x10] sm:$0xff]
        %1349 = vmatpush.bf16.msra.mxu0 %v753
        %1350 = vmatpush.bf16.msra.mxu0 %v750
        %1351 = vmatpush.bf16.msra.mxu0 %v747
        %1352 = vmatpush.bf16.msra.mxu0 %v744
        %1353 = vmatpush.bf16.msra.mxu0 %v741
        %1354 = vmatpush.bf16.msra.mxu0 %v738
        %1355 = vmatpush.bf16.msra.mxu0 %v735
        %1356 = vmatpush.bf16.msra.mxu0 %v732
        %1357 = vmatmul.bf16.gmra.mxu0 %v1340
        %v1358 = vpop.f32.mrf.mxu0
        %v1359 = vadd.f32 0.0, %v1358
        %v1360 = vpop.f32.mrf.mxu0
        %1361 = vdwg.mxu0
        %1362 = vmatpush.bf16.msra.mxu0 %v754
        %1363 = vmatpush.bf16.msra.mxu0 %v751
        %1364 = vmatpush.bf16.msra.mxu0 %v748
        %1365 = vmatpush.bf16.msra.mxu0 %v745
        %1366 = vmatpush.bf16.msra.mxu0 %v742
        %1367 = vmatpush.bf16.msra.mxu0 %v739
        %1368 = vmatpush.bf16.msra.mxu0 %v736
        %1369 = vmatpush.bf16.msra.mxu0 %v733
        %1370 = vmatmul.bf16.gmra.mxu0 %v1340
        %v1371 = vpop.f32.mrf.mxu0
        %v1372 = vadd.f32 0.0, %v1371
        %v1373 = vpop.f32.mrf.mxu0
        %1374 = vdwg.mxu0
        %1375 = vmatpush.bf16.msra.mxu0 %v755
        %1376 = vmatpush.bf16.msra.mxu0 %v752
        %1377 = vmatpush.bf16.msra.mxu0 %v749
        %1378 = vmatpush.bf16.msra.mxu0 %v746
        %1379 = vmatpush.bf16.msra.mxu0 %v743
        %1380 = vmatpush.bf16.msra.mxu0 %v740
        %1381 = vmatpush.bf16.msra.mxu0 %v737
        %1382 = vmatpush.bf16.msra.mxu0 %v734
        %1383 = vmatmul.bf16.gmra.mxu0 %v1340
        %v1384 = vpop.f32.mrf.mxu0
        %v1385 = vadd.f32 0.0, %v1384
        %v1386 = vpop.f32.mrf.mxu0
        %1387 = vdwg.mxu0
        %v1388 = vadd.f32 %v1346, %v1359
        %v1389 = vxor.u32 %v1388, 2147483648
        %v1390 = vmul.f32 %v1389, 1.442695
        %v1391 = vpow.pop %v1390
        %v1392 = vadd.f32 %v1391, 1.0
        %v1393 = vrcp.pop %v1392
        %v1394 = vmul.f32 %v1392, %v1393
        %v1395 = vsub.f32 1.0, %v1394
        %v1396 = vmul.f32 %v1393, %v1395
        %v1397 = vadd.f32 %v1393, %v1396
        %vm1398 = vweird.f32 %v1392
        %vm1399 = vweird.f32 %v1393
        %vm1400 = vmor %vm1398, %vm1399
        %v1401 = vsel %vm1400, %v1393, %v1397
        %v1402 = vand.u32 2147483647, %v1392
        %vm1403 = vcmp.eq.f32.partialorder %v1402, 8.507059e+37
        %v1404 = vand.u32 %v1392, 2147483648
        %v1405 = vor.u32 1.1754944e-38, %v1404
        %v1406 = vsel %vm1403, %v1405, %v1401
        %v1407 = vmul.f32 1.0, %v1406
        %v1408 = vadd.f32 %v1347, %v1372
        %v1409 = vxor.u32 %v1408, 2147483648
        %v1410 = vmul.f32 %v1409, 1.442695
        %v1411 = vpow.pop %v1410
        %v1412 = vadd.f32 %v1411, 1.0
        %v1413 = vrcp.pop %v1412
        %v1414 = vmul.f32 %v1412, %v1413
        %v1415 = vsub.f32 1.0, %v1414
        %v1416 = vmul.f32 %v1413, %v1415
        %v1417 = vadd.f32 %v1413, %v1416
        %vm1418 = vweird.f32 %v1412
        %vm1419 = vweird.f32 %v1413
        %vm1420 = vmor %vm1418, %vm1419
        %v1421 = vsel %vm1420, %v1413, %v1417
        %v1422 = vand.u32 2147483647, %v1412
        %vm1423 = vcmp.eq.f32.partialorder %v1422, 8.507059e+37
        %v1424 = vand.u32 %v1412, 2147483648
        %v1425 = vor.u32 1.1754944e-38, %v1424
        %v1426 = vsel %vm1423, %v1425, %v1421
        %v1427 = vmul.f32 1.0, %v1426
        %v1428 = vadd.f32 %v1385, %v642
        %v1429 = vmul.f32 %v1407, %v1428
        %v1430 = vadd.f32 %v1348, %v1429
        %v1431 = vtanh.pop %v1430
        %v1432 = vsub.f32 %v1339, %v1431
        %v1433 = vmul.f32 %v1427, %v1432
        %v1434 = vadd.f32 %v1431, %v1433
        %v1435 = vpack.c.bf16 %v1434, %v1434
        %s1436 = scalar_lea.vmem %s309, 24 [#allocation12]
        %1437 = vst [vmem:[%s1436] sm:$0xf] %v1435
        %s1438 = smul.u32 7, 3
        %s1439 = smul.addr %s1438, 8
        %s1440 = scalar_lea.vmem [#allocation3], %s1439
        %v1441 = vld [vmem:[%s1440] sm:$0xff]
        %v1442 = vld [vmem:[%s1440 + $0x8] sm:$0xff]
        %v1443 = vld [vmem:[%s1440 + $0x10] sm:$0xff]
        %1444 = vmatpush.bf16.msra.mxu0 %v753
        %1445 = vmatpush.bf16.msra.mxu0 %v750
        %1446 = vmatpush.bf16.msra.mxu0 %v747
        %1447 = vmatpush.bf16.msra.mxu0 %v744
        %1448 = vmatpush.bf16.msra.mxu0 %v741
        %1449 = vmatpush.bf16.msra.mxu0 %v738
        %1450 = vmatpush.bf16.msra.mxu0 %v735
        %1451 = vmatpush.bf16.msra.mxu0 %v732
        %1452 = vmatmul.bf16.gmra.mxu0 %v1435
        %v1453 = vpop.f32.mrf.mxu0
        %v1454 = vadd.f32 0.0, %v1453
        %v1455 = vpop.f32.mrf.mxu0
        %1456 = vdwg.mxu0
        %1457 = vmatpush.bf16.msra.mxu0 %v754
        %1458 = vmatpush.bf16.msra.mxu0 %v751
        %1459 = vmatpush.bf16.msra.mxu0 %v748
        %1460 = vmatpush.bf16.msra.mxu0 %v745
        %1461 = vmatpush.bf16.msra.mxu0 %v742
        %1462 = vmatpush.bf16.msra.mxu0 %v739
        %1463 = vmatpush.bf16.msra.mxu0 %v736
        %1464 = vmatpush.bf16.msra.mxu0 %v733
        %1465 = vmatmul.bf16.gmra.mxu0 %v1435
        %v1466 = vpop.f32.mrf.mxu0
        %v1467 = vadd.f32 0.0, %v1466
        %v1468 = vpop.f32.mrf.mxu0
        %1469 = vdwg.mxu0
        %1470 = vmatpush.bf16.msra.mxu0 %v755
        %1471 = vmatpush.bf16.msra.mxu0 %v752
        %1472 = vmatpush.bf16.msra.mxu0 %v749
        %1473 = vmatpush.bf16.msra.mxu0 %v746
        %1474 = vmatpush.bf16.msra.mxu0 %v743
        %1475 = vmatpush.bf16.msra.mxu0 %v740
        %1476 = vmatpush.bf16.msra.mxu0 %v737
        %1477 = vmatpush.bf16.msra.mxu0 %v734
        %1478 = vmatmul.bf16.gmra.mxu0 %v1435
        %v1479 = vpop.f32.mrf.mxu0
        %v1480 = vadd.f32 0.0, %v1479
        %v1481 = vpop.f32.mrf.mxu0
        %1482 = vdwg.mxu0
        %v1483 = vadd.f32 %v1441, %v1454
        %v1484 = vxor.u32 %v1483, 2147483648
        %v1485 = vmul.f32 %v1484, 1.442695
        %v1486 = vpow.pop %v1485
        %v1487 = vadd.f32 %v1486, 1.0
        %v1488 = vrcp.pop %v1487
        %v1489 = vmul.f32 %v1487, %v1488
        %v1490 = vsub.f32 1.0, %v1489
        %v1491 = vmul.f32 %v1488, %v1490
        %v1492 = vadd.f32 %v1488, %v1491
        %vm1493 = vweird.f32 %v1487
        %vm1494 = vweird.f32 %v1488
        %vm1495 = vmor %vm1493, %vm1494
        %v1496 = vsel %vm1495, %v1488, %v1492
        %v1497 = vand.u32 2147483647, %v1487
        %vm1498 = vcmp.eq.f32.partialorder %v1497, 8.507059e+37
        %v1499 = vand.u32 %v1487, 2147483648
        %v1500 = vor.u32 1.1754944e-38, %v1499
        %v1501 = vsel %vm1498, %v1500, %v1496
        %v1502 = vmul.f32 1.0, %v1501
        %v1503 = vadd.f32 %v1442, %v1467
        %v1504 = vxor.u32 %v1503, 2147483648
        %v1505 = vmul.f32 %v1504, 1.442695
        %v1506 = vpow.pop %v1505
        %v1507 = vadd.f32 %v1506, 1.0
        %v1508 = vrcp.pop %v1507
        %v1509 = vmul.f32 %v1507, %v1508
        %v1510 = vsub.f32 1.0, %v1509
        %v1511 = vmul.f32 %v1508, %v1510
        %v1512 = vadd.f32 %v1508, %v1511
        %vm1513 = vweird.f32 %v1507
        %vm1514 = vweird.f32 %v1508
        %vm1515 = vmor %vm1513, %vm1514
        %v1516 = vsel %vm1515, %v1508, %v1512
        %v1517 = vand.u32 2147483647, %v1507
        %vm1518 = vcmp.eq.f32.partialorder %v1517, 8.507059e+37
        %v1519 = vand.u32 %v1507, 2147483648
        %v1520 = vor.u32 1.1754944e-38, %v1519
        %v1521 = vsel %vm1518, %v1520, %v1516
        %v1522 = vmul.f32 1.0, %v1521
        %v1523 = vadd.f32 %v1480, %v642
        %v1524 = vmul.f32 %v1502, %v1523
        %v1525 = vadd.f32 %v1443, %v1524
        %v1526 = vtanh.pop %v1525
        %v1527 = vsub.f32 %v1434, %v1526
        %v1528 = vmul.f32 %v1522, %v1527
        %v1529 = vadd.f32 %v1526, %v1528
        %v1530 = vpack.c.bf16 %v1529, %v1529
        %s1531 = scalar_lea.vmem %s309, 28 [#allocation12]
        %1532 = vst [vmem:[%s1531] sm:$0xf] %v1530
        %1533 = vst [vmem:[#allocation2] sm:$0xff] %v1529
        %s1534 = sand.u32 %s158, 1
        %s1535 = scalar_lea.sflag [#allocation6], %s1534
        %s1536 = sand.u32 %s158, 1
        %s1537 = smul.addr %s1536, 32
        %s1538 = scalar_lea.vmem [#allocation12], %s1537
        // Predicated region
        $region61: #{tpu_custom_call.1} parent=39 // pred_check
          %p1539 = pneg %p168
        $region62: #{tpu_custom_call.1} parent=39 // pred_check_branch
          %1541 = sbr.rel (%p1539) target = $region64
        $region63: #{tpu_custom_call.1} parent=39 // pred_region
          %s1542 = smul.u32 8, %s29
          %1544 = vsyncadd %s1535, 0
          %s1545 = sadd.s32 %s28, %s1542
          %s1546 = smul.addr %s1545, 4
          %s1547 = scalar_lea.hbm %s5, %s1546
          %s1548 = sshll.u32 %s1538, 4
          %s1549 = int_to_ptr.vmem [resolvable:$true] %s1548
          %s1550 = sshll.u32 %s1547, 4
          %s1551 = int_to_ptr.hbm [resolvable:$true] %s1550
          %1556 = dma.vmem_to_hbm [thread:$0]  %s1549, 512, %s1551, %s1535, 64, 64, 4
        $region64: #{tpu_custom_call.1} parent=39 // pred_fallthru
          _
      $region40: #{tpu_custom_call.1} parent=5 // pred_fallthru
        _
      %p1557 = scmp.le.s32.totalorder 2, %s19
      // Predicated region
      $region65: #{tpu_custom_call.1} parent=5 // pred_check
        %p1558 = pneg %p1557
      $region66: #{tpu_custom_call.1} parent=5 // pred_check_branch
        %1560 = sbr.rel (%p1558) target = $region68
      $region67: #{tpu_custom_call.1} parent=5 // pred_region
        %s1561 = ssub.s32 %s19, 2
        // Predicated region
        $region69: #{tpu_custom_call.1} parent=67 // pred_check
          %p1562 = pneg %p174
        $region70: #{tpu_custom_call.1} parent=67 // pred_check_branch
          %1564 = sbr.rel (%p1562) target = $region72
        $region71: #{tpu_custom_call.1} parent=67 // pred_region
          %s1565 = sand.u32 %s159, 1
          %s1566 = scalar_lea.sflag [#allocation6], %s1565
          %s1567 = sand.u32 %s159, 1
          %s1568 = smul.addr %s1567, 32
          %s1569 = scalar_lea.vmem [#allocation12], %s1568
          %1571 = dma.done %s1566, 512
        $region72: #{tpu_custom_call.1} parent=67 // pred_fallthru
          _
      $region68: #{tpu_custom_call.1} parent=5 // pred_fallthru
        _
    $region6: #{tpu_custom_call.1} parent=1 // loop_footer
      %s23 = sadd.s32 1, %s19
    $region7: #{tpu_custom_call.1} parent=1 // loop_footer_branch
      %18 = sbr.rel target = $region3
    $region8: #{tpu_custom_call.1} parent=1 // loop_exit
      _
    %1572 = vsyncpa [#allocation5], 1
    %s1573 = scalar_lea.sflag [#allocation5], 1
    %1574 = vsyncpa %s1573, 1
    %1575 = vsyncpa [#allocation8], 1
    %1576 = vsyncpa [#allocation11], 1
    %1577 = vsyncpa [#allocation6], 1
    %s1578 = scalar_lea.sflag [#allocation6], 1
    %1579 = vsyncpa %s1578, 1

</llo_original>
